<compile_context>
chip_gen: v6e
topology: v6e:2x2x1
jax: 0.10.0
libtpu: 0.0.40
codegen_flags: <defaults>
</compile_context>

<pallas_src>
import jax
import jax.numpy as jnp
from jax import lax
from jax.experimental import pallas as pl
from jax.experimental.pallas import tpu as pltpu


def conv_thingy_forward(x, w, gamma, beta, kernel_size, *, block_n=None):
    """x: (N, C_in, L) f32, w: (C_out, C_in, K) f32 -> (N, C_out, L) f32."""
    n, c_in, l = x.shape
    c_out = w.shape[0]
    k = kernel_size
    pad_l = (k - 1) // 2
    eps = 1e-5

    if block_n is None:
        # Largest divisor of N whose (double-buffered) input tile stays modest; at
        # small shapes this is the whole batch -> a single fused grid step.
        block_n = n
        while block_n > 1 and (n % block_n != 0
                               or 2 * 4 * block_n * c_in * l > 8 * 1024 * 1024):
            block_n -= 1
    assert n % block_n == 0, "batch must be divisible by block_n"
    n_tiles = n // block_n

    out_slab_bytes = 4 * n * c_out * l
    assert out_slab_bytes <= 32 * 1024 * 1024, (
        "conv slab does not fit VMEM; see TODO(synk) about the recompute variant")

    x = x.astype(jnp.float32)
    w_t = jnp.transpose(w.astype(jnp.float32), (2, 0, 1))        # (K, C_out, C_in)
    g2 = gamma.astype(jnp.float32).reshape(c_out, 1)
    b2 = beta.astype(jnp.float32).reshape(c_out, 1)

    inv_count = 1.0 / float(n * l)

    def fused_kernel(x_ref, w_ref, g_ref, b_ref, o_ref):
        i = pl.program_id(0)
        xt = x_ref[...]                                          # (block_n, C_in, L)
        j = lax.broadcasted_iota(jnp.int32, (block_n, c_in, l), 2)

        # K tap-shifted, zero-masked views of the tile: replaces ConstantPad1d and
        # the im2col staging copies.  roll goes to the XLU (free slot); the edge
        # mask zeroes exactly the positions the constant pad would have supplied.
        taps = []
        for t in range(k):
            s = pad_l - t                                        # tap t reads x[..., j - s]
            if s == 0:
                taps.append(xt)
            else:
                rolled = pltpu.roll(xt, shift=s % l, axis=2)
                valid = (j >= s) & (j < l + s)
                taps.append(jnp.where(valid, rolled, 0.0))

        w_taps = [w_ref[t] for t in range(k)]                    # (C_out, C_in) each

        # Conv: K accumulated MXU matmuls per batch row, written straight into the
        # VMEM-resident output slab (no intermediate HBM tensor).
        for nn in range(block_n):
            acc = jnp.zeros((c_out, l), jnp.float32)
            for t in range(k):
                acc = acc + jnp.dot(w_taps[t], taps[t][nn],
                                    preferred_element_type=jnp.float32)
            o_ref[i * block_n + nn, :, :] = acc

        # Last grid step: training-mode BatchNorm (centered two-pass stats over
        # (N, L), biased variance) + ReLU, applied in place on the resident slab.
        @pl.when(i == n_tiles - 1)
        def _():
            conv = o_ref[...]                                    # (N, C_out, L)
            mean = jnp.sum(jnp.sum(conv, axis=2, keepdims=True),
                           axis=0, keepdims=True) * inv_count    # (1, C_out, 1)
            diff = conv - mean
            var = jnp.sum(jnp.sum(diff * diff, axis=2, keepdims=True),
                          axis=0, keepdims=True) * inv_count     # (1, C_out, 1)
            scale = g_ref[...] * lax.rsqrt(var[0] + eps)         # (C_out, 1)
            shift = b_ref[...] - mean[0] * scale                 # (C_out, 1)
            o_ref[...] = jnp.maximum(conv * scale[None] + shift[None], 0.0)

    # VMEM plan from the actual buffer sizes (generation-aware; v7x has 64 MiB).
    in_tile_bytes = 4 * block_n * c_in * l
    param_bytes = 4 * (k * c_out * c_in + 2 * c_out)
    working_bytes = (2 * out_slab_bytes                  # resident output slab (+margin)
                     + (2 + k) * in_tile_bytes           # dbl-buffered input + tap temps
                     + 2 * param_bytes)
    vmem_limit = int(min(64 * 1024 * 1024,
                         max(16 * 1024 * 1024, 4 * working_bytes)))

    return pl.pallas_call(
        fused_kernel,
        out_shape=jax.ShapeDtypeStruct((n, c_out, l), jnp.float32),
        grid_spec=pltpu.PrefetchScalarGridSpec(
            num_scalar_prefetch=0,
            grid=(n_tiles,),
            in_specs=[
                pl.BlockSpec((block_n, c_in, l), lambda i: (i, 0, 0)),
                pl.BlockSpec((k, c_out, c_in), lambda i: (0, 0, 0)),
                pl.BlockSpec((c_out, 1), lambda i: (0, 0)),
                pl.BlockSpec((c_out, 1), lambda i: (0, 0)),
            ],
            # Constant block index => output stays VMEM-resident across the whole
            # grid and is DMA'd to HBM exactly once, after the BN+ReLU finalize.
            out_specs=pl.BlockSpec((n, c_out, l), lambda i: (0, 0, 0)),
        ),
        compiler_params=pltpu.CompilerParams(
            # Later steps (and the BN finalize) read conv rows written by earlier
            # steps of the same resident slab, so the axis is a carried reduction.
            dimension_semantics=("arbitrary",),
            vmem_limit_bytes=vmem_limit,
        ),
        cost_estimate=pl.CostEstimate(
            flops=2 * n * c_out * l * c_in * k + 6 * n * c_out * l,
            transcendentals=c_out,
            bytes_accessed=4 * (n * c_in * l + n * c_out * l
                                + k * c_out * c_in + 2 * c_out),
        ),
    )(x, w_t, g2, b2)


def reference_forward(x, w, b, gamma, beta, kernel_size):
    """Faithful JAX port of the PyTorch module (conv bias included)."""
    pad_l = (kernel_size - 1) // 2
    pad_r = kernel_size // 2
    conv = lax.conv_general_dilated(
        x, w, window_strides=(1,), padding=[(pad_l, pad_r)],
        dimension_numbers=('NCH', 'OIH', 'NCH'),
        precision=lax.Precision.HIGHEST)
    conv = conv + b[None, :, None]
    mean = conv.mean(axis=(0, 2), keepdims=True)
    var = jnp.mean(jnp.square(conv - mean), axis=(0, 2), keepdims=True)
    y = (conv - mean) * lax.rsqrt(var + 1e-5)
    y = y * gamma[None, :, None] + beta[None, :, None]
    return jnp.maximum(y, 0.0)


if __name__ == "__main__":
    # Small shapes: batch=4, in_channels=8, out_channels=16, length=128, kernel=3.
    N, C_IN, C_OUT, L, K = 4, 8, 16, 128, 3

    key = jax.random.PRNGKey(0)
    kx, kw, kb = jax.random.split(key, 3)

    x = jax.random.normal(kx, (N, C_IN, L), dtype=jnp.float32)

    # Deterministic synthetic parameter init (shapes from nn.Conv1d / nn.BatchNorm1d).
    fan_in = C_IN * K
    bound = 1.0 / (fan_in ** 0.5)
    w = jax.random.uniform(kw, (C_OUT, C_IN, K), jnp.float32, -bound, bound)
    b = jax.random.uniform(kb, (C_OUT,), jnp.float32, -bound, bound)
    gamma = jnp.ones((C_OUT,), jnp.float32)   # BatchNorm1d default weight
    beta = jnp.zeros((C_OUT,), jnp.float32)   # BatchNorm1d default bias

    # Snap x / w to bf16-representable values so the comparison is insensitive to
    # which f32-matmul pass scheme the MXU uses (accumulation is f32 in both paths).
    x = lax.convert_element_type(lax.convert_element_type(x, jnp.bfloat16), jnp.float32)
    w = lax.convert_element_type(lax.convert_element_type(w, jnp.bfloat16), jnp.float32)

    ref = reference_forward(x, w, b, gamma, beta, K)

    # Default tiling: block_n = N -> single fused grid step.
    out = conv_thingy_forward(x, w, gamma, beta, K)
    out = jax.block_until_ready(out)
    assert out.shape == (N, C_OUT, L)
    assert jnp.allclose(out, ref, atol=1e-4), "mismatch vs JAX reference (fused)"

    # Also exercise the multi-tile path (resident-slab carry across grid steps).
    out2 = conv_thingy_forward(x, w, gamma, beta, K, block_n=2)
    out2 = jax.block_until_ready(out2)
    assert jnp.allclose(out2, ref, atol=1e-4), "mismatch vs JAX reference (tiled)"

    print("KERNEL_OK")
</pallas_src>

<mosaic_0001>
module attributes {stable_mosaic.version = 11 : i64} {
  func.func @fused_kernel(%arg0: i32, %arg1: memref<4x8x128xf32, #tpu.memory_space<vmem>>, %arg2: memref<3x16x8xf32, #tpu.memory_space<vmem>>, %arg3: memref<16x1xf32, #tpu.memory_space<vmem>>, %arg4: memref<16x1xf32, #tpu.memory_space<vmem>>, %arg5: memref<4x16x128xf32, #tpu.memory_space<vmem>>) attributes {dimension_semantics = [#tpu.dimension_semantics<arbitrary>], iteration_bounds = array<i64: 1>, scalar_prefetch = 0 : i64, scratch_operands = 0 : i64, tpu.core_type = #tpu.core_type<tc>, window_params = [{transform_indices = @transform_0, window_bounds = array<i64: 4, 8, 128>}, {pipeline_mode = #tpu.pipeline_mode<synchronous>, transform_indices = @transform_1, window_bounds = array<i64: 3, 16, 8>}, {pipeline_mode = #tpu.pipeline_mode<synchronous>, transform_indices = @transform_2, window_bounds = array<i64: 16, 1>}, {pipeline_mode = #tpu.pipeline_mode<synchronous>, transform_indices = @transform_3, window_bounds = array<i64: 16, 1>}, {pipeline_mode = #tpu.pipeline_mode<synchronous>, transform_indices = @transform_4, window_bounds = array<i64: 4, 16, 128>}]} {
    %c0 = arith.constant 0 : index
    %c0_0 = arith.constant 0 : index
    %c0_1 = arith.constant 0 : index
    %0 = vector.load %arg1[%c0, %c0_0, %c0_1] : memref<4x8x128xf32, #tpu.memory_space<vmem>>, vector<4x8x128xf32>
    %1 = tpu.iota {dimensions = array<i32: 2>} : vector<4x8x128xi32>
    %c1_i32 = arith.constant 1 : i32
    %2 = tpu.dynamic_rotate %0 by %c1_i32 dim 2 : vector<4x8x128xf32>, i32 -> vector<4x8x128xf32>
    %c1_i32_2 = arith.constant 1 : i32
    %3 = vector.broadcast %c1_i32_2 : i32 to vector<4x8x128xi32>
    %4 = arith.cmpi sge, %1, %3 : vector<4x8x128xi32>
    %c129_i32 = arith.constant 129 : i32
    %5 = vector.broadcast %c129_i32 : i32 to vector<4x8x128xi32>
    %6 = arith.cmpi slt, %1, %5 : vector<4x8x128xi32>
    %7 = arith.andi %4, %6 : vector<4x8x128xi1>
    %cst = arith.constant 0.000000e+00 : f32
    %8 = vector.broadcast %cst : f32 to vector<4x8x128xf32>
    %9 = arith.select %7, %2, %8 : vector<4x8x128xi1>, vector<4x8x128xf32>
    %c127_i32 = arith.constant 127 : i32
    %10 = tpu.dynamic_rotate %0 by %c127_i32 dim 2 : vector<4x8x128xf32>, i32 -> vector<4x8x128xf32>
    %c-1_i32 = arith.constant -1 : i32
    %11 = vector.broadcast %c-1_i32 : i32 to vector<4x8x128xi32>
    %12 = arith.cmpi sge, %1, %11 : vector<4x8x128xi32>
    %c127_i32_3 = arith.constant 127 : i32
    %13 = vector.broadcast %c127_i32_3 : i32 to vector<4x8x128xi32>
    %14 = arith.cmpi slt, %1, %13 : vector<4x8x128xi32>
    %15 = arith.andi %12, %14 : vector<4x8x128xi1>
    %cst_4 = arith.constant 0.000000e+00 : f32
    %16 = vector.broadcast %cst_4 : f32 to vector<4x8x128xf32>
    %17 = arith.select %15, %10, %16 : vector<4x8x128xi1>, vector<4x8x128xf32>
    %c0_5 = arith.constant 0 : index
    %c0_6 = arith.constant 0 : index
    %c0_7 = arith.constant 0 : index
    %18 = vector.load %arg2[%c0_5, %c0_6, %c0_7] : memref<3x16x8xf32, #tpu.memory_space<vmem>>, vector<1x16x8xf32>
    %19 = vector.shape_cast %18 : vector<1x16x8xf32> to vector<16x8xf32>
    %c1 = arith.constant 1 : index
    %c0_8 = arith.constant 0 : index
    %c0_9 = arith.constant 0 : index
    %20 = vector.load %arg2[%c1, %c0_8, %c0_9] : memref<3x16x8xf32, #tpu.memory_space<vmem>>, vector<1x16x8xf32>
    %21 = vector.shape_cast %20 : vector<1x16x8xf32> to vector<16x8xf32>
    %c2 = arith.constant 2 : index
    %c0_10 = arith.constant 0 : index
    %c0_11 = arith.constant 0 : index
    %22 = vector.load %arg2[%c2, %c0_10, %c0_11] : memref<3x16x8xf32, #tpu.memory_space<vmem>>, vector<1x16x8xf32>
    %23 = vector.shape_cast %22 : vector<1x16x8xf32> to vector<16x8xf32>
    %cst_12 = arith.constant 0.000000e+00 : f32
    %24 = vector.broadcast %cst_12 : f32 to vector<16x128xf32>
    %25 = vector.extract_strided_slice %9 {offsets = [0, 0, 0], sizes = [1, 8, 128], strides = [1, 1, 1]} : vector<4x8x128xf32> to vector<1x8x128xf32>
    %26 = vector.shape_cast %25 : vector<1x8x128xf32> to vector<8x128xf32>
    %cst_13 = arith.constant dense<0.000000e+00> : vector<16x128xf32>
    %27 = tpu.matmul %19, %26, %cst_13 {dimension_numbers = #tpu.dot_dimension_numbers<[1], [0], [0], [1], [0, 0, 1, 1], [], []>} : vector<16x8xf32>, vector<8x128xf32>, vector<16x128xf32> -> vector<16x128xf32>
    %28 = arith.addf %24, %27 : vector<16x128xf32>
    %29 = vector.extract_strided_slice %0 {offsets = [0, 0, 0], sizes = [1, 8, 128], strides = [1, 1, 1]} : vector<4x8x128xf32> to vector<1x8x128xf32>
    %30 = vector.shape_cast %29 : vector<1x8x128xf32> to vector<8x128xf32>
    %cst_14 = arith.constant dense<0.000000e+00> : vector<16x128xf32>
    %31 = tpu.matmul %21, %30, %cst_14 {dimension_numbers = #tpu.dot_dimension_numbers<[1], [0], [0], [1], [0, 0, 1, 1], [], []>} : vector<16x8xf32>, vector<8x128xf32>, vector<16x128xf32> -> vector<16x128xf32>
    %32 = arith.addf %28, %31 : vector<16x128xf32>
    %33 = vector.extract_strided_slice %17 {offsets = [0, 0, 0], sizes = [1, 8, 128], strides = [1, 1, 1]} : vector<4x8x128xf32> to vector<1x8x128xf32>
    %34 = vector.shape_cast %33 : vector<1x8x128xf32> to vector<8x128xf32>
    %cst_15 = arith.constant dense<0.000000e+00> : vector<16x128xf32>
    %35 = tpu.matmul %23, %34, %cst_15 {dimension_numbers = #tpu.dot_dimension_numbers<[1], [0], [0], [1], [0, 0, 1, 1], [], []>} : vector<16x8xf32>, vector<8x128xf32>, vector<16x128xf32> -> vector<16x128xf32>
    %36 = arith.addf %32, %35 : vector<16x128xf32>
    %c4_i32 = arith.constant 4 : i32
    %37 = arith.muli %arg0, %c4_i32 : i32
    %c0_i32 = arith.constant 0 : i32
    %38 = arith.addi %37, %c0_i32 : i32
    %39 = arith.index_cast %38 : i32 to index
    %c0_16 = arith.constant 0 : index
    %c0_17 = arith.constant 0 : index
    %40 = vector.load %arg5[%39, %c0_16, %c0_17] : memref<4x16x128xf32, #tpu.memory_space<vmem>>, vector<1x16x128xf32>
    %41 = vector.shape_cast %40 : vector<1x16x128xf32> to vector<16x128xf32>
    %42 = vector.shape_cast %36 : vector<16x128xf32> to vector<1x16x128xf32>
    tpu.vector_store %arg5[%39, %c0_16, %c0_17], %42 {strides = array<i32>} : memref<4x16x128xf32, #tpu.memory_space<vmem>>, vector<1x16x128xf32>,
    %cst_18 = arith.constant 0.000000e+00 : f32
    %43 = vector.broadcast %cst_18 : f32 to vector<16x128xf32>
    %44 = vector.extract_strided_slice %9 {offsets = [1, 0, 0], sizes = [1, 8, 128], strides = [1, 1, 1]} : vector<4x8x128xf32> to vector<1x8x128xf32>
    %45 = vector.shape_cast %44 : vector<1x8x128xf32> to vector<8x128xf32>
    %cst_19 = arith.constant dense<0.000000e+00> : vector<16x128xf32>
    %46 = tpu.matmul %19, %45, %cst_19 {dimension_numbers = #tpu.dot_dimension_numbers<[1], [0], [0], [1], [0, 0, 1, 1], [], []>} : vector<16x8xf32>, vector<8x128xf32>, vector<16x128xf32> -> vector<16x128xf32>
    %47 = arith.addf %43, %46 : vector<16x128xf32>
    %48 = vector.extract_strided_slice %0 {offsets = [1, 0, 0], sizes = [1, 8, 128], strides = [1, 1, 1]} : vector<4x8x128xf32> to vector<1x8x128xf32>
    %49 = vector.shape_cast %48 : vector<1x8x128xf32> to vector<8x128xf32>
    %cst_20 = arith.constant dense<0.000000e+00> : vector<16x128xf32>
    %50 = tpu.matmul %21, %49, %cst_20 {dimension_numbers = #tpu.dot_dimension_numbers<[1], [0], [0], [1], [0, 0, 1, 1], [], []>} : vector<16x8xf32>, vector<8x128xf32>, vector<16x128xf32> -> vector<16x128xf32>
    %51 = arith.addf %47, %50 : vector<16x128xf32>
    %52 = vector.extract_strided_slice %17 {offsets = [1, 0, 0], sizes = [1, 8, 128], strides = [1, 1, 1]} : vector<4x8x128xf32> to vector<1x8x128xf32>
    %53 = vector.shape_cast %52 : vector<1x8x128xf32> to vector<8x128xf32>
    %cst_21 = arith.constant dense<0.000000e+00> : vector<16x128xf32>
    %54 = tpu.matmul %23, %53, %cst_21 {dimension_numbers = #tpu.dot_dimension_numbers<[1], [0], [0], [1], [0, 0, 1, 1], [], []>} : vector<16x8xf32>, vector<8x128xf32>, vector<16x128xf32> -> vector<16x128xf32>
    %55 = arith.addf %51, %54 : vector<16x128xf32>
    %c4_i32_22 = arith.constant 4 : i32
    %56 = arith.muli %arg0, %c4_i32_22 : i32
    %c1_i32_23 = arith.constant 1 : i32
    %57 = arith.addi %56, %c1_i32_23 : i32
    %58 = arith.index_cast %57 : i32 to index
    %c0_24 = arith.constant 0 : index
    %c0_25 = arith.constant 0 : index
    %59 = vector.load %arg5[%58, %c0_24, %c0_25] : memref<4x16x128xf32, #tpu.memory_space<vmem>>, vector<1x16x128xf32>
    %60 = vector.shape_cast %59 : vector<1x16x128xf32> to vector<16x128xf32>
    %61 = vector.shape_cast %55 : vector<16x128xf32> to vector<1x16x128xf32>
    tpu.vector_store %arg5[%58, %c0_24, %c0_25], %61 {strides = array<i32>} : memref<4x16x128xf32, #tpu.memory_space<vmem>>, vector<1x16x128xf32>,
    %cst_26 = arith.constant 0.000000e+00 : f32
    %62 = vector.broadcast %cst_26 : f32 to vector<16x128xf32>
    %63 = vector.extract_strided_slice %9 {offsets = [2, 0, 0], sizes = [1, 8, 128], strides = [1, 1, 1]} : vector<4x8x128xf32> to vector<1x8x128xf32>
    %64 = vector.shape_cast %63 : vector<1x8x128xf32> to vector<8x128xf32>
    %cst_27 = arith.constant dense<0.000000e+00> : vector<16x128xf32>
    %65 = tpu.matmul %19, %64, %cst_27 {dimension_numbers = #tpu.dot_dimension_numbers<[1], [0], [0], [1], [0, 0, 1, 1], [], []>} : vector<16x8xf32>, vector<8x128xf32>, vector<16x128xf32> -> vector<16x128xf32>
    %66 = arith.addf %62, %65 : vector<16x128xf32>
    %67 = vector.extract_strided_slice %0 {offsets = [2, 0, 0], sizes = [1, 8, 128], strides = [1, 1, 1]} : vector<4x8x128xf32> to vector<1x8x128xf32>
    %68 = vector.shape_cast %67 : vector<1x8x128xf32> to vector<8x128xf32>
    %cst_28 = arith.constant dense<0.000000e+00> : vector<16x128xf32>
    %69 = tpu.matmul %21, %68, %cst_28 {dimension_numbers = #tpu.dot_dimension_numbers<[1], [0], [0], [1], [0, 0, 1, 1], [], []>} : vector<16x8xf32>, vector<8x128xf32>, vector<16x128xf32> -> vector<16x128xf32>
    %70 = arith.addf %66, %69 : vector<16x128xf32>
    %71 = vector.extract_strided_slice %17 {offsets = [2, 0, 0], sizes = [1, 8, 128], strides = [1, 1, 1]} : vector<4x8x128xf32> to vector<1x8x128xf32>
    %72 = vector.shape_cast %71 : vector<1x8x128xf32> to vector<8x128xf32>
    %cst_29 = arith.constant dense<0.000000e+00> : vector<16x128xf32>
    %73 = tpu.matmul %23, %72, %cst_29 {dimension_numbers = #tpu.dot_dimension_numbers<[1], [0], [0], [1], [0, 0, 1, 1], [], []>} : vector<16x8xf32>, vector<8x128xf32>, vector<16x128xf32> -> vector<16x128xf32>
    %74 = arith.addf %70, %73 : vector<16x128xf32>
    %c4_i32_30 = arith.constant 4 : i32
    %75 = arith.muli %arg0, %c4_i32_30 : i32
    %c2_i32 = arith.constant 2 : i32
    %76 = arith.addi %75, %c2_i32 : i32
    %77 = arith.index_cast %76 : i32 to index
    %c0_31 = arith.constant 0 : index
    %c0_32 = arith.constant 0 : index
    %78 = vector.load %arg5[%77, %c0_31, %c0_32] : memref<4x16x128xf32, #tpu.memory_space<vmem>>, vector<1x16x128xf32>
    %79 = vector.shape_cast %78 : vector<1x16x128xf32> to vector<16x128xf32>
    %80 = vector.shape_cast %74 : vector<16x128xf32> to vector<1x16x128xf32>
    tpu.vector_store %arg5[%77, %c0_31, %c0_32], %80 {strides = array<i32>} : memref<4x16x128xf32, #tpu.memory_space<vmem>>, vector<1x16x128xf32>,
    %cst_33 = arith.constant 0.000000e+00 : f32
    %81 = vector.broadcast %cst_33 : f32 to vector<16x128xf32>
    %82 = vector.extract_strided_slice %9 {offsets = [3, 0, 0], sizes = [1, 8, 128], strides = [1, 1, 1]} : vector<4x8x128xf32> to vector<1x8x128xf32>
    %83 = vector.shape_cast %82 : vector<1x8x128xf32> to vector<8x128xf32>
    %cst_34 = arith.constant dense<0.000000e+00> : vector<16x128xf32>
    %84 = tpu.matmul %19, %83, %cst_34 {dimension_numbers = #tpu.dot_dimension_numbers<[1], [0], [0], [1], [0, 0, 1, 1], [], []>} : vector<16x8xf32>, vector<8x128xf32>, vector<16x128xf32> -> vector<16x128xf32>
    %85 = arith.addf %81, %84 : vector<16x128xf32>
    %86 = vector.extract_strided_slice %0 {offsets = [3, 0, 0], sizes = [1, 8, 128], strides = [1, 1, 1]} : vector<4x8x128xf32> to vector<1x8x128xf32>
    %87 = vector.shape_cast %86 : vector<1x8x128xf32> to vector<8x128xf32>
    %cst_35 = arith.constant dense<0.000000e+00> : vector<16x128xf32>
    %88 = tpu.matmul %21, %87, %cst_35 {dimension_numbers = #tpu.dot_dimension_numbers<[1], [0], [0], [1], [0, 0, 1, 1], [], []>} : vector<16x8xf32>, vector<8x128xf32>, vector<16x128xf32> -> vector<16x128xf32>
    %89 = arith.addf %85, %88 : vector<16x128xf32>
    %90 = vector.extract_strided_slice %17 {offsets = [3, 0, 0], sizes = [1, 8, 128], strides = [1, 1, 1]} : vector<4x8x128xf32> to vector<1x8x128xf32>
    %91 = vector.shape_cast %90 : vector<1x8x128xf32> to vector<8x128xf32>
    %cst_36 = arith.constant dense<0.000000e+00> : vector<16x128xf32>
    %92 = tpu.matmul %23, %91, %cst_36 {dimension_numbers = #tpu.dot_dimension_numbers<[1], [0], [0], [1], [0, 0, 1, 1], [], []>} : vector<16x8xf32>, vector<8x128xf32>, vector<16x128xf32> -> vector<16x128xf32>
    %93 = arith.addf %89, %92 : vector<16x128xf32>
    %c4_i32_37 = arith.constant 4 : i32
    %94 = arith.muli %arg0, %c4_i32_37 : i32
    %c3_i32 = arith.constant 3 : i32
    %95 = arith.addi %94, %c3_i32 : i32
    %96 = arith.index_cast %95 : i32 to index
    %c0_38 = arith.constant 0 : index
    %c0_39 = arith.constant 0 : index
    %97 = vector.load %arg5[%96, %c0_38, %c0_39] : memref<4x16x128xf32, #tpu.memory_space<vmem>>, vector<1x16x128xf32>
    %98 = vector.shape_cast %97 : vector<1x16x128xf32> to vector<16x128xf32>
    %99 = vector.shape_cast %93 : vector<16x128xf32> to vector<1x16x128xf32>
    tpu.vector_store %arg5[%96, %c0_38, %c0_39], %99 {strides = array<i32>} : memref<4x16x128xf32, #tpu.memory_space<vmem>>, vector<1x16x128xf32>,
    %c0_i32_40 = arith.constant 0 : i32
    %100 = arith.cmpi eq, %arg0, %c0_i32_40 : i32
    %101 = arith.extui %100 : i1 to i32
    %c0_i32_41 = arith.constant 0 : i32
    %102 = arith.cmpi ne, %101, %c0_i32_41 : i32
    scf.if %102 {
      %c0_42 = arith.constant 0 : index
      %c0_43 = arith.constant 0 : index
      %c0_44 = arith.constant 0 : index
      %103 = vector.load %arg5[%c0_42, %c0_43, %c0_44] : memref<4x16x128xf32, #tpu.memory_space<vmem>>, vector<4x16x128xf32>
      %cst_45 = arith.constant dense<0.000000e+00> : vector<4x16xf32>
      %104 = vector.multi_reduction <add>, %103, %cst_45 [2] : vector<4x16x128xf32> to vector<4x16xf32>
      %105 = vector.shape_cast %104 : vector<4x16xf32> to vector<4x16x1xf32>
      %cst_46 = arith.constant dense<0.000000e+00> : vector<16x1xf32>
      %106 = vector.multi_reduction <add>, %105, %cst_46 [0] : vector<4x16x1xf32> to vector<16x1xf32>
      %107 = vector.shape_cast %106 : vector<16x1xf32> to vector<1x16x1xf32>
      %cst_47 = arith.constant 0.001953125 : f32
      %108 = vector.broadcast %cst_47 : f32 to vector<1x16x1xf32>
      %109 = arith.mulf %107, %108 : vector<1x16x1xf32>
      %110 = vector.broadcast %109 : vector<1x16x1xf32> to vector<4x16x128xf32>
      %111 = arith.subf %103, %110 : vector<4x16x128xf32>
      %112 = arith.mulf %111, %111 : vector<4x16x128xf32>
      %cst_48 = arith.constant dense<0.000000e+00> : vector<4x16xf32>
      %113 = vector.multi_reduction <add>, %112, %cst_48 [2] : vector<4x16x128xf32> to vector<4x16xf32>
      %114 = vector.shape_cast %113 : vector<4x16xf32> to vector<4x16x1xf32>
      %cst_49 = arith.constant dense<0.000000e+00> : vector<16x1xf32>
      %115 = vector.multi_reduction <add>, %114, %cst_49 [0] : vector<4x16x1xf32> to vector<16x1xf32>
      %116 = vector.shape_cast %115 : vector<16x1xf32> to vector<1x16x1xf32>
      %cst_50 = arith.constant 0.001953125 : f32
      %117 = vector.broadcast %cst_50 : f32 to vector<1x16x1xf32>
      %118 = arith.mulf %116, %117 : vector<1x16x1xf32>
      %c0_51 = arith.constant 0 : index
      %c0_52 = arith.constant 0 : index
      %119 = vector.load %arg3[%c0_51, %c0_52] : memref<16x1xf32, #tpu.memory_space<vmem>>, vector<16x1xf32>
      %120 = vector.shape_cast %118 : vector<1x16x1xf32> to vector<16x1xf32>
      %cst_53 = arith.constant 9.99999974E-6 : f32
      %121 = vector.broadcast %cst_53 : f32 to vector<16x1xf32>
      %122 = arith.addf %120, %121 : vector<16x1xf32>
      %123 = math.rsqrt %122 : vector<16x1xf32>
      %124 = arith.mulf %119, %123 : vector<16x1xf32>
      %c0_54 = arith.constant 0 : index
      %c0_55 = arith.constant 0 : index
      %125 = vector.load %arg4[%c0_54, %c0_55] : memref<16x1xf32, #tpu.memory_space<vmem>>, vector<16x1xf32>
      %126 = vector.shape_cast %109 : vector<1x16x1xf32> to vector<16x1xf32>
      %127 = arith.mulf %126, %124 : vector<16x1xf32>
      %128 = arith.subf %125, %127 : vector<16x1xf32>
      %129 = vector.shape_cast %124 : vector<16x1xf32> to vector<1x16x1xf32>
      %130 = vector.broadcast %129 : vector<1x16x1xf32> to vector<4x16x128xf32>
      %131 = arith.mulf %103, %130 : vector<4x16x128xf32>
      %132 = vector.shape_cast %128 : vector<16x1xf32> to vector<1x16x1xf32>
      %133 = vector.broadcast %132 : vector<1x16x1xf32> to vector<4x16x128xf32>
      %134 = arith.addf %131, %133 : vector<4x16x128xf32>
      %cst_56 = arith.constant 0.000000e+00 : f32
      %135 = vector.broadcast %cst_56 : f32 to vector<4x16x128xf32>
      %136 = arith.maximumf %134, %135 : vector<4x16x128xf32>
      %c0_57 = arith.constant 0 : index
      %c0_58 = arith.constant 0 : index
      %c0_59 = arith.constant 0 : index
      %137 = vector.load %arg5[%c0_57, %c0_58, %c0_59] : memref<4x16x128xf32, #tpu.memory_space<vmem>>, vector<4x16x128xf32>
      tpu.vector_store %arg5[%c0_57, %c0_58, %c0_59], %136 {strides = array<i32>} : memref<4x16x128xf32, #tpu.memory_space<vmem>>, vector<4x16x128xf32>,
    } else {
    }
    return
  }
  func.func @transform_0(%arg0: i32) -> (i32, i32, i32) {
    %c0_i32 = arith.constant 0 : i32
    %c0_i32_0 = arith.constant 0 : i32
    %c0_i32_1 = arith.constant 0 : i32
    return %arg0, %c0_i32, %c0_i32_0 : i32, i32, i32
  }
  func.func @transform_1(%arg0: i32) -> (i32, i32, i32) {
    %c0_i32 = arith.constant 0 : i32
    %c0_i32_0 = arith.constant 0 : i32
    %c0_i32_1 = arith.constant 0 : i32
    %c0_i32_2 = arith.constant 0 : i32
    return %c0_i32, %c0_i32_0, %c0_i32_1 : i32, i32, i32
  }
  func.func @transform_2(%arg0: i32) -> (i32, i32) {
    %c0_i32 = arith.constant 0 : i32
    %c0_i32_0 = arith.constant 0 : i32
    %c0_i32_1 = arith.constant 0 : i32
    return %c0_i32, %c0_i32_0 : i32, i32
  }
  func.func @transform_3(%arg0: i32) -> (i32, i32) {
    %c0_i32 = arith.constant 0 : i32
    %c0_i32_0 = arith.constant 0 : i32
    %c0_i32_1 = arith.constant 0 : i32
    return %c0_i32, %c0_i32_0 : i32, i32
  }
  func.func @transform_4(%arg0: i32) -> (i32, i32, i32) {
    %c0_i32 = arith.constant 0 : i32
    %c0_i32_0 = arith.constant 0 : i32
    %c0_i32_1 = arith.constant 0 : i32
    %c0_i32_2 = arith.constant 0 : i32
    return %c0_i32, %c0_i32_0, %c0_i32_1 : i32, i32, i32
  }
}

</mosaic_0001>

<llo_original>
// kernel: tpu_custom_call.1
$region0: #{tpu_custom_call.1}
  #allocation0 [shape = 'u32[]', space=smem, size = 0x4, offset = 0x4, fixed_abs, tag = 'smem constant byte address 0x4 - core index']
  #allocation1 [shape = 'u32[144,128]{1,0:T(1,128)}', space=vmem, size = 0x12000, scoped, tag = 'internal scratch']
  %s0 = inlined_call_operand.vmem [shape: f32[4,8,128], index: 0, kind: input, shape index: {}]
  %s1 = inlined_call_operand.vmem [shape: f32[3,16,8], index: 1, kind: input, shape index: {}]
  %s2 = inlined_call_operand.vmem [shape: f32[16,1], index: 2, kind: input, shape index: {}]
  %s3 = inlined_call_operand.vmem [shape: f32[16,1], index: 3, kind: input, shape index: {}]
  %s4 = inlined_call_operand.hbm [shape: f32[4,16,128], index: 4, kind: output, shape index: {}]
  %s5 = sld [smem:[#allocation0]]
  $region30: #{tpu_custom_call.1} parent=0
    _
  %s7 = ssub.s32 1, %s5
  %s8 = scalar_select 0, %s7, %s5
  $region1: #{tpu_custom_call.1} parent=0
    #allocation2 [shape = 'u8[32768]{0}', space=vmem, size = 0x8000, scoped, tag = 'output window, operand 0, single buffered']
    #allocation3 [shape = 's32[1]{0}', space=sflag, size = 0x4, scoped, tag = 'scoped memory for tpu_custom_call.1']
    %9 = vsyncpa [#allocation3], 0
    // Predicated region
    $region2: #{tpu_custom_call.1} parent=1 // pred_check
      _
    $region3: #{tpu_custom_call.1} parent=1 // pred_check_branch
      %11 = sbr.rel (0) target = $region5
    $region4: #{tpu_custom_call.1} parent=1 // pred_region
      _
    $region5: #{tpu_custom_call.1} parent=1 // pred_fallthru
      _
    // Predicated region
    $region6: #{tpu_custom_call.1} parent=1 // pred_check
      _
    $region7: #{tpu_custom_call.1} parent=1 // pred_check_branch
      %13 = sbr.rel (0) target = $region9
    $region8: #{tpu_custom_call.1} parent=1 // pred_region
      _
    $region9: #{tpu_custom_call.1} parent=1 // pred_fallthru
      _
    // Predicated region
    $region10: #{tpu_custom_call.1} parent=1 // pred_check
      _
    $region11: #{tpu_custom_call.1} parent=1 // pred_check_branch
      %15 = sbr.rel (0) target = $region13
    $region12: #{tpu_custom_call.1} parent=1 // pred_region
      _
    $region13: #{tpu_custom_call.1} parent=1 // pred_fallthru
      _
    // Predicated region
    $region14: #{tpu_custom_call.1} parent=1 // pred_check
      _
    $region15: #{tpu_custom_call.1} parent=1 // pred_check_branch
      %17 = sbr.rel (0) target = $region17
    $region16: #{tpu_custom_call.1} parent=1 // pred_region
      _
    $region17: #{tpu_custom_call.1} parent=1 // pred_fallthru
      _
    %v18 = vld [vmem:[%s0] sm:$0xff]
    %v19 = vld [vmem:[%s0 + $0x8] sm:$0xff]
    %v20 = vld [vmem:[%s0 + $0x10] sm:$0xff]
    %v21 = vld [vmem:[%s0 + $0x18] sm:$0xff]
    %v22 = vlaneseq
    %v23 = vand.u32 %v22, 127
    %24 = vrot.lane.b32.xlu0 %v18, 1
    %v25 = vpop.permute.xlu0 %24
    %26 = vrot.lane.b32.xlu0 %v19, 1
    %v27 = vpop.permute.xlu0 %26
    %28 = vrot.lane.b32.xlu0 %v20, 1
    %v29 = vpop.permute.xlu0 %28
    %30 = vrot.lane.b32.xlu0 %v21, 1
    %v31 = vpop.permute.xlu0 %30
    %vm32 = vcmp.ge.s32.totalorder %v23, 1
    %vm33 = vcmp.lt.s32.totalorder %v23, 129
    %vm34 = vmand %vm32, %vm33
    %v35 = vsel %vm34, %v25, 0.0
    %v36 = vsel %vm34, %v27, 0.0
    %v37 = vsel %vm34, %v29, 0.0
    %v38 = vsel %vm34, %v31, 0.0
    %39 = vrot.lane.b32.xlu0 %v18, 127
    %v40 = vpop.permute.xlu0 %39
    %41 = vrot.lane.b32.xlu0 %v19, 127
    %v42 = vpop.permute.xlu0 %41
    %43 = vrot.lane.b32.xlu0 %v20, 127
    %v44 = vpop.permute.xlu0 %43
    %45 = vrot.lane.b32.xlu0 %v21, 127
    %v46 = vpop.permute.xlu0 %45
    %vm47 = vcmp.ge.s32.totalorder %v23, 4294967295
    %vm48 = vcmp.lt.s32.totalorder %v23, 127
    %vm49 = vmand %vm47, %vm48
    %v50 = vsel %vm49, %v40, 0.0
    %v51 = vsel %vm49, %v42, 0.0
    %v52 = vsel %vm49, %v44, 0.0
    %v53 = vsel %vm49, %v46, 0.0
    %v54 = vld [vmem:[%s1] sm:$0xff]
    %v55 = vld [vmem:[%s1 + $0x8] sm:$0xff]
    %s56 = scalar_lea.vmem %s1, 16
    %v57 = vld [vmem:[%s56] sm:$0xff]
    %v58 = vld [vmem:[%s56 + $0x8] sm:$0xff]
    %s59 = scalar_lea.vmem %s1, 32
    %v60 = vld [vmem:[%s59] sm:$0xff]
    %v61 = vld [vmem:[%s59 + $0x8] sm:$0xff]
    %vm62 = vcmask 64512
    %v64 = vsel %vm62, %v57, 0
    %v67 = vsel %vm62, %v58, 0
    %69 = vmatprep.subr.mxu0 0.0
    %70 = vmatpush1.msra.mxu0 0.0
    %71 = vmatprep.subr.mxu0 0.0
    %72 = vmatpush1.msra.mxu0 0.0
    %73 = vmatprep.subr.mxu0 0.0
    %74 = vmatpush1.msra.mxu0 0.0
    %75 = vmatprep.subr.mxu0 0.0
    %76 = vmatpush1.msra.mxu0 0.0
    %77 = vmatprep.subr.mxu0 0.0
    %78 = vmatpush1.msra.mxu0 0.0
    %79 = vmatprep.subr.mxu0 0.0
    %80 = vmatpush1.msra.mxu0 0.0
    %81 = vmatprep.subr.mxu0 0.0
    %82 = vmatpush1.msra.mxu0 0.0
    %83 = vmatprep.subr.mxu0 0.0
    %84 = vmatpush1.msra.mxu0 0.0
    %85 = vmatprep.subr.mxu0 0.0
    %86 = vmatpush1.msra.mxu0 0.0
    %87 = vmatprep.subr.mxu0 0.0
    %88 = vmatpush1.msra.mxu0 0.0
    %89 = vmatprep.subr.mxu0 0.0
    %90 = vmatpush1.msra.mxu0 0.0
    %91 = vmatprep.subr.mxu0 0.0
    %92 = vmatpush1.msra.mxu0 0.0
    %93 = vmatprep.subr.mxu0 0.0
    %94 = vmatpush1.msra.mxu0 0.0
    %95 = vmatprep.subr.mxu0 0.0
    %96 = vmatpush1.msra.mxu0 0.0
    %97 = vmatprep.subr.mxu0 0.0
    %98 = vmatpush1.msra.mxu0 0.0
    %99 = vmatprep.subr.mxu0 0.0
    %100 = vmatpush1.msra.mxu0 %v18
    %101 = vmatprep.subr.mxu0 0.0
    %102 = vmatpush2.msra.mxu0 0.0
    %103 = vmatprep.subr.mxu0 0.0
    %104 = vmatpush2.msra.mxu0 0.0
    %105 = vmatprep.subr.mxu0 0.0
    %106 = vmatpush2.msra.mxu0 0.0
    %107 = vmatprep.subr.mxu0 0.0
    %108 = vmatpush2.msra.mxu0 0.0
    %109 = vmatprep.subr.mxu0 0.0
    %110 = vmatpush2.msra.mxu0 0.0
    %111 = vmatprep.subr.mxu0 0.0
    %112 = vmatpush2.msra.mxu0 0.0
    %113 = vmatprep.subr.mxu0 0.0
    %114 = vmatpush2.msra.mxu0 0.0
    %115 = vmatprep.subr.mxu0 0.0
    %116 = vmatpush2.msra.mxu0 0.0
    %117 = vmatprep.subr.mxu0 0.0
    %118 = vmatpush2.msra.mxu0 0.0
    %119 = vmatprep.subr.mxu0 0.0
    %120 = vmatpush2.msra.mxu0 0.0
    %121 = vmatprep.subr.mxu0 0.0
    %122 = vmatpush2.msra.mxu0 0.0
    %123 = vmatprep.subr.mxu0 0.0
    %124 = vmatpush2.msra.mxu0 0.0
    %125 = vmatprep.subr.mxu0 0.0
    %126 = vmatpush2.msra.mxu0 0.0
    %127 = vmatprep.subr.mxu0 0.0
    %128 = vmatpush2.msra.mxu0 0.0
    %129 = vmatprep.subr.mxu0 0.0
    %130 = vmatpush2.msra.mxu0 0.0
    %131 = vmatprep.subr.mxu0 0.0
    %132 = vmatpush2.msra.mxu0 0.0
    %133 = vmatprep.mubr.f32.mxu0 0.0
    %134 = vmatmul.mubr.f32.gmra.mxu0 %v64
    %v135 = vpop.f32.mrf.mxu0
    %v136 = vadd.f32 0.0, %v135
    %v137 = vpop.f32.mrf.mxu0
    %138 = vmatprep.mubr.f32.mxu0 0.0
    %139 = vmatmul.mubr.f32.gmra.mxu0 %v67
    %v140 = vpop.f32.mrf.mxu0
    %v141 = vadd.f32 0.0, %v140
    %v142 = vpop.f32.mrf.mxu0
    %143 = vdwg.mxu0
    %v145 = vsel %vm62, %v54, 0
    %v148 = vsel %vm62, %v55, 0
    %150 = vmatprep.subr.mxu0 0.0
    %151 = vmatpush1.msra.mxu0 0.0
    %152 = vmatprep.subr.mxu0 0.0
    %153 = vmatpush1.msra.mxu0 0.0
    %154 = vmatprep.subr.mxu0 0.0
    %155 = vmatpush1.msra.mxu0 0.0
    %156 = vmatprep.subr.mxu0 0.0
    %157 = vmatpush1.msra.mxu0 0.0
    %158 = vmatprep.subr.mxu0 0.0
    %159 = vmatpush1.msra.mxu0 0.0
    %160 = vmatprep.subr.mxu0 0.0
    %161 = vmatpush1.msra.mxu0 0.0
    %162 = vmatprep.subr.mxu0 0.0
    %163 = vmatpush1.msra.mxu0 0.0
    %164 = vmatprep.subr.mxu0 0.0
    %165 = vmatpush1.msra.mxu0 0.0
    %166 = vmatprep.subr.mxu0 0.0
    %167 = vmatpush1.msra.mxu0 0.0
    %168 = vmatprep.subr.mxu0 0.0
    %169 = vmatpush1.msra.mxu0 0.0
    %170 = vmatprep.subr.mxu0 0.0
    %171 = vmatpush1.msra.mxu0 0.0
    %172 = vmatprep.subr.mxu0 0.0
    %173 = vmatpush1.msra.mxu0 0.0
    %174 = vmatprep.subr.mxu0 0.0
    %175 = vmatpush1.msra.mxu0 0.0
    %176 = vmatprep.subr.mxu0 0.0
    %177 = vmatpush1.msra.mxu0 0.0
    %178 = vmatprep.subr.mxu0 0.0
    %179 = vmatpush1.msra.mxu0 0.0
    %180 = vmatprep.subr.mxu0 0.0
    %181 = vmatpush1.msra.mxu0 %v35
    %182 = vmatprep.subr.mxu0 0.0
    %183 = vmatpush2.msra.mxu0 0.0
    %184 = vmatprep.subr.mxu0 0.0
    %185 = vmatpush2.msra.mxu0 0.0
    %186 = vmatprep.subr.mxu0 0.0
    %187 = vmatpush2.msra.mxu0 0.0
    %188 = vmatprep.subr.mxu0 0.0
    %189 = vmatpush2.msra.mxu0 0.0
    %190 = vmatprep.subr.mxu0 0.0
    %191 = vmatpush2.msra.mxu0 0.0
    %192 = vmatprep.subr.mxu0 0.0
    %193 = vmatpush2.msra.mxu0 0.0
    %194 = vmatprep.subr.mxu0 0.0
    %195 = vmatpush2.msra.mxu0 0.0
    %196 = vmatprep.subr.mxu0 0.0
    %197 = vmatpush2.msra.mxu0 0.0
    %198 = vmatprep.subr.mxu0 0.0
    %199 = vmatpush2.msra.mxu0 0.0
    %200 = vmatprep.subr.mxu0 0.0
    %201 = vmatpush2.msra.mxu0 0.0
    %202 = vmatprep.subr.mxu0 0.0
    %203 = vmatpush2.msra.mxu0 0.0
    %204 = vmatprep.subr.mxu0 0.0
    %205 = vmatpush2.msra.mxu0 0.0
    %206 = vmatprep.subr.mxu0 0.0
    %207 = vmatpush2.msra.mxu0 0.0
    %208 = vmatprep.subr.mxu0 0.0
    %209 = vmatpush2.msra.mxu0 0.0
    %210 = vmatprep.subr.mxu0 0.0
    %211 = vmatpush2.msra.mxu0 0.0
    %212 = vmatprep.subr.mxu0 0.0
    %213 = vmatpush2.msra.mxu0 0.0
    %214 = vmatprep.mubr.f32.mxu0 0.0
    %215 = vmatmul.mubr.f32.gmra.mxu0 %v145
    %v216 = vpop.f32.mrf.mxu0
    %v217 = vadd.f32 %v136, %v216
    %v218 = vpop.f32.mrf.mxu0
    %219 = vmatprep.mubr.f32.mxu0 0.0
    %220 = vmatmul.mubr.f32.gmra.mxu0 %v148
    %v221 = vpop.f32.mrf.mxu0
    %v222 = vadd.f32 %v141, %v221
    %v223 = vpop.f32.mrf.mxu0
    %224 = vdwg.mxu0
    %v226 = vsel %vm62, %v60, 0
    %v229 = vsel %vm62, %v61, 0
    %231 = vmatprep.subr.mxu0 0.0
    %232 = vmatpush1.msra.mxu0 0.0
    %233 = vmatprep.subr.mxu0 0.0
    %234 = vmatpush1.msra.mxu0 0.0
    %235 = vmatprep.subr.mxu0 0.0
    %236 = vmatpush1.msra.mxu0 0.0
    %237 = vmatprep.subr.mxu0 0.0
    %238 = vmatpush1.msra.mxu0 0.0
    %239 = vmatprep.subr.mxu0 0.0
    %240 = vmatpush1.msra.mxu0 0.0
    %241 = vmatprep.subr.mxu0 0.0
    %242 = vmatpush1.msra.mxu0 0.0
    %243 = vmatprep.subr.mxu0 0.0
    %244 = vmatpush1.msra.mxu0 0.0
    %245 = vmatprep.subr.mxu0 0.0
    %246 = vmatpush1.msra.mxu0 0.0
    %247 = vmatprep.subr.mxu0 0.0
    %248 = vmatpush1.msra.mxu0 0.0
    %249 = vmatprep.subr.mxu0 0.0
    %250 = vmatpush1.msra.mxu0 0.0
    %251 = vmatprep.subr.mxu0 0.0
    %252 = vmatpush1.msra.mxu0 0.0
    %253 = vmatprep.subr.mxu0 0.0
    %254 = vmatpush1.msra.mxu0 0.0
    %255 = vmatprep.subr.mxu0 0.0
    %256 = vmatpush1.msra.mxu0 0.0
    %257 = vmatprep.subr.mxu0 0.0
    %258 = vmatpush1.msra.mxu0 0.0
    %259 = vmatprep.subr.mxu0 0.0
    %260 = vmatpush1.msra.mxu0 0.0
    %261 = vmatprep.subr.mxu0 0.0
    %262 = vmatpush1.msra.mxu0 %v50
    %263 = vmatprep.subr.mxu0 0.0
    %264 = vmatpush2.msra.mxu0 0.0
    %265 = vmatprep.subr.mxu0 0.0
    %266 = vmatpush2.msra.mxu0 0.0
    %267 = vmatprep.subr.mxu0 0.0
    %268 = vmatpush2.msra.mxu0 0.0
    %269 = vmatprep.subr.mxu0 0.0
    %270 = vmatpush2.msra.mxu0 0.0
    %271 = vmatprep.subr.mxu0 0.0
    %272 = vmatpush2.msra.mxu0 0.0
    %273 = vmatprep.subr.mxu0 0.0
    %274 = vmatpush2.msra.mxu0 0.0
    %275 = vmatprep.subr.mxu0 0.0
    %276 = vmatpush2.msra.mxu0 0.0
    %277 = vmatprep.subr.mxu0 0.0
    %278 = vmatpush2.msra.mxu0 0.0
    %279 = vmatprep.subr.mxu0 0.0
    %280 = vmatpush2.msra.mxu0 0.0
    %281 = vmatprep.subr.mxu0 0.0
    %282 = vmatpush2.msra.mxu0 0.0
    %283 = vmatprep.subr.mxu0 0.0
    %284 = vmatpush2.msra.mxu0 0.0
    %285 = vmatprep.subr.mxu0 0.0
    %286 = vmatpush2.msra.mxu0 0.0
    %287 = vmatprep.subr.mxu0 0.0
    %288 = vmatpush2.msra.mxu0 0.0
    %289 = vmatprep.subr.mxu0 0.0
    %290 = vmatpush2.msra.mxu0 0.0
    %291 = vmatprep.subr.mxu0 0.0
    %292 = vmatpush2.msra.mxu0 0.0
    %293 = vmatprep.subr.mxu0 0.0
    %294 = vmatpush2.msra.mxu0 0.0
    %295 = vmatprep.mubr.f32.mxu0 0.0
    %296 = vmatmul.mubr.f32.gmra.mxu0 %v226
    %v297 = vpop.f32.mrf.mxu0
    %v298 = vadd.f32 0.0, %v297
    %v299 = vpop.f32.mrf.mxu0
    %300 = vmatprep.mubr.f32.mxu0 0.0
    %301 = vmatmul.mubr.f32.gmra.mxu0 %v229
    %v302 = vpop.f32.mrf.mxu0
    %v303 = vadd.f32 0.0, %v302
    %v304 = vpop.f32.mrf.mxu0
    %305 = vdwg.mxu0
    %v306 = vadd.f32 %v217, %v298
    %v307 = vadd.f32 %v222, %v303
    %s308 = smul.u32 0, 4
    %s309 = smul.u32 %s308, 16
    %s310 = scalar_lea.vmem [#allocation2], %s309
    %311 = vst [vmem:[%s310] sm:$0xff] %v306
    %312 = vst [vmem:[%s310 + $0x8] sm:$0xff] %v307
    %313 = vmatprep.subr.mxu0 0.0
    %314 = vmatpush1.msra.mxu0 0.0
    %315 = vmatprep.subr.mxu0 0.0
    %316 = vmatpush1.msra.mxu0 0.0
    %317 = vmatprep.subr.mxu0 0.0
    %318 = vmatpush1.msra.mxu0 0.0
    %319 = vmatprep.subr.mxu0 0.0
    %320 = vmatpush1.msra.mxu0 0.0
    %321 = vmatprep.subr.mxu0 0.0
    %322 = vmatpush1.msra.mxu0 0.0
    %323 = vmatprep.subr.mxu0 0.0
    %324 = vmatpush1.msra.mxu0 0.0
    %325 = vmatprep.subr.mxu0 0.0
    %326 = vmatpush1.msra.mxu0 0.0
    %327 = vmatprep.subr.mxu0 0.0
    %328 = vmatpush1.msra.mxu0 0.0
    %329 = vmatprep.subr.mxu0 0.0
    %330 = vmatpush1.msra.mxu0 0.0
    %331 = vmatprep.subr.mxu0 0.0
    %332 = vmatpush1.msra.mxu0 0.0
    %333 = vmatprep.subr.mxu0 0.0
    %334 = vmatpush1.msra.mxu0 0.0
    %335 = vmatprep.subr.mxu0 0.0
    %336 = vmatpush1.msra.mxu0 0.0
    %337 = vmatprep.subr.mxu0 0.0
    %338 = vmatpush1.msra.mxu0 0.0
    %339 = vmatprep.subr.mxu0 0.0
    %340 = vmatpush1.msra.mxu0 0.0
    %341 = vmatprep.subr.mxu0 0.0
    %342 = vmatpush1.msra.mxu0 0.0
    %343 = vmatprep.subr.mxu0 0.0
    %344 = vmatpush1.msra.mxu0 %v19
    %345 = vmatprep.subr.mxu0 0.0
    %346 = vmatpush2.msra.mxu0 0.0
    %347 = vmatprep.subr.mxu0 0.0
    %348 = vmatpush2.msra.mxu0 0.0
    %349 = vmatprep.subr.mxu0 0.0
    %350 = vmatpush2.msra.mxu0 0.0
    %351 = vmatprep.subr.mxu0 0.0
    %352 = vmatpush2.msra.mxu0 0.0
    %353 = vmatprep.subr.mxu0 0.0
    %354 = vmatpush2.msra.mxu0 0.0
    %355 = vmatprep.subr.mxu0 0.0
    %356 = vmatpush2.msra.mxu0 0.0
    %357 = vmatprep.subr.mxu0 0.0
    %358 = vmatpush2.msra.mxu0 0.0
    %359 = vmatprep.subr.mxu0 0.0
    %360 = vmatpush2.msra.mxu0 0.0
    %361 = vmatprep.subr.mxu0 0.0
    %362 = vmatpush2.msra.mxu0 0.0
    %363 = vmatprep.subr.mxu0 0.0
    %364 = vmatpush2.msra.mxu0 0.0
    %365 = vmatprep.subr.mxu0 0.0
    %366 = vmatpush2.msra.mxu0 0.0
    %367 = vmatprep.subr.mxu0 0.0
    %368 = vmatpush2.msra.mxu0 0.0
    %369 = vmatprep.subr.mxu0 0.0
    %370 = vmatpush2.msra.mxu0 0.0
    %371 = vmatprep.subr.mxu0 0.0
    %372 = vmatpush2.msra.mxu0 0.0
    %373 = vmatprep.subr.mxu0 0.0
    %374 = vmatpush2.msra.mxu0 0.0
    %375 = vmatprep.subr.mxu0 0.0
    %376 = vmatpush2.msra.mxu0 0.0
    %377 = vmatprep.mubr.f32.mxu0 0.0
    %378 = vmatmul.mubr.f32.gmra.mxu0 %v64
    %v379 = vpop.f32.mrf.mxu0
    %v380 = vadd.f32 0.0, %v379
    %v381 = vpop.f32.mrf.mxu0
    %382 = vmatprep.mubr.f32.mxu0 0.0
    %383 = vmatmul.mubr.f32.gmra.mxu0 %v67
    %v384 = vpop.f32.mrf.mxu0
    %v385 = vadd.f32 0.0, %v384
    %v386 = vpop.f32.mrf.mxu0
    %387 = vdwg.mxu0
    %388 = vmatprep.subr.mxu0 0.0
    %389 = vmatpush1.msra.mxu0 0.0
    %390 = vmatprep.subr.mxu0 0.0
    %391 = vmatpush1.msra.mxu0 0.0
    %392 = vmatprep.subr.mxu0 0.0
    %393 = vmatpush1.msra.mxu0 0.0
    %394 = vmatprep.subr.mxu0 0.0
    %395 = vmatpush1.msra.mxu0 0.0
    %396 = vmatprep.subr.mxu0 0.0
    %397 = vmatpush1.msra.mxu0 0.0
    %398 = vmatprep.subr.mxu0 0.0
    %399 = vmatpush1.msra.mxu0 0.0
    %400 = vmatprep.subr.mxu0 0.0
    %401 = vmatpush1.msra.mxu0 0.0
    %402 = vmatprep.subr.mxu0 0.0
    %403 = vmatpush1.msra.mxu0 0.0
    %404 = vmatprep.subr.mxu0 0.0
    %405 = vmatpush1.msra.mxu0 0.0
    %406 = vmatprep.subr.mxu0 0.0
    %407 = vmatpush1.msra.mxu0 0.0
    %408 = vmatprep.subr.mxu0 0.0
    %409 = vmatpush1.msra.mxu0 0.0
    %410 = vmatprep.subr.mxu0 0.0
    %411 = vmatpush1.msra.mxu0 0.0
    %412 = vmatprep.subr.mxu0 0.0
    %413 = vmatpush1.msra.mxu0 0.0
    %414 = vmatprep.subr.mxu0 0.0
    %415 = vmatpush1.msra.mxu0 0.0
    %416 = vmatprep.subr.mxu0 0.0
    %417 = vmatpush1.msra.mxu0 0.0
    %418 = vmatprep.subr.mxu0 0.0
    %419 = vmatpush1.msra.mxu0 %v36
    %420 = vmatprep.subr.mxu0 0.0
    %421 = vmatpush2.msra.mxu0 0.0
    %422 = vmatprep.subr.mxu0 0.0
    %423 = vmatpush2.msra.mxu0 0.0
    %424 = vmatprep.subr.mxu0 0.0
    %425 = vmatpush2.msra.mxu0 0.0
    %426 = vmatprep.subr.mxu0 0.0
    %427 = vmatpush2.msra.mxu0 0.0
    %428 = vmatprep.subr.mxu0 0.0
    %429 = vmatpush2.msra.mxu0 0.0
    %430 = vmatprep.subr.mxu0 0.0
    %431 = vmatpush2.msra.mxu0 0.0
    %432 = vmatprep.subr.mxu0 0.0
    %433 = vmatpush2.msra.mxu0 0.0
    %434 = vmatprep.subr.mxu0 0.0
    %435 = vmatpush2.msra.mxu0 0.0
    %436 = vmatprep.subr.mxu0 0.0
    %437 = vmatpush2.msra.mxu0 0.0
    %438 = vmatprep.subr.mxu0 0.0
    %439 = vmatpush2.msra.mxu0 0.0
    %440 = vmatprep.subr.mxu0 0.0
    %441 = vmatpush2.msra.mxu0 0.0
    %442 = vmatprep.subr.mxu0 0.0
    %443 = vmatpush2.msra.mxu0 0.0
    %444 = vmatprep.subr.mxu0 0.0
    %445 = vmatpush2.msra.mxu0 0.0
    %446 = vmatprep.subr.mxu0 0.0
    %447 = vmatpush2.msra.mxu0 0.0
    %448 = vmatprep.subr.mxu0 0.0
    %449 = vmatpush2.msra.mxu0 0.0
    %450 = vmatprep.subr.mxu0 0.0
    %451 = vmatpush2.msra.mxu0 0.0
    %452 = vmatprep.mubr.f32.mxu0 0.0
    %453 = vmatmul.mubr.f32.gmra.mxu0 %v145
    %v454 = vpop.f32.mrf.mxu0
    %v455 = vadd.f32 %v380, %v454
    %v456 = vpop.f32.mrf.mxu0
    %457 = vmatprep.mubr.f32.mxu0 0.0
    %458 = vmatmul.mubr.f32.gmra.mxu0 %v148
    %v459 = vpop.f32.mrf.mxu0
    %v460 = vadd.f32 %v385, %v459
    %v461 = vpop.f32.mrf.mxu0
    %462 = vdwg.mxu0
    %463 = vmatprep.subr.mxu0 0.0
    %464 = vmatpush1.msra.mxu0 0.0
    %465 = vmatprep.subr.mxu0 0.0
    %466 = vmatpush1.msra.mxu0 0.0
    %467 = vmatprep.subr.mxu0 0.0
    %468 = vmatpush1.msra.mxu0 0.0
    %469 = vmatprep.subr.mxu0 0.0
    %470 = vmatpush1.msra.mxu0 0.0
    %471 = vmatprep.subr.mxu0 0.0
    %472 = vmatpush1.msra.mxu0 0.0
    %473 = vmatprep.subr.mxu0 0.0
    %474 = vmatpush1.msra.mxu0 0.0
    %475 = vmatprep.subr.mxu0 0.0
    %476 = vmatpush1.msra.mxu0 0.0
    %477 = vmatprep.subr.mxu0 0.0
    %478 = vmatpush1.msra.mxu0 0.0
    %479 = vmatprep.subr.mxu0 0.0
    %480 = vmatpush1.msra.mxu0 0.0
    %481 = vmatprep.subr.mxu0 0.0
    %482 = vmatpush1.msra.mxu0 0.0
    %483 = vmatprep.subr.mxu0 0.0
    %484 = vmatpush1.msra.mxu0 0.0
    %485 = vmatprep.subr.mxu0 0.0
    %486 = vmatpush1.msra.mxu0 0.0
    %487 = vmatprep.subr.mxu0 0.0
    %488 = vmatpush1.msra.mxu0 0.0
    %489 = vmatprep.subr.mxu0 0.0
    %490 = vmatpush1.msra.mxu0 0.0
    %491 = vmatprep.subr.mxu0 0.0
    %492 = vmatpush1.msra.mxu0 0.0
    %493 = vmatprep.subr.mxu0 0.0
    %494 = vmatpush1.msra.mxu0 %v51
    %495 = vmatprep.subr.mxu0 0.0
    %496 = vmatpush2.msra.mxu0 0.0
    %497 = vmatprep.subr.mxu0 0.0
    %498 = vmatpush2.msra.mxu0 0.0
    %499 = vmatprep.subr.mxu0 0.0
    %500 = vmatpush2.msra.mxu0 0.0
    %501 = vmatprep.subr.mxu0 0.0
    %502 = vmatpush2.msra.mxu0 0.0
    %503 = vmatprep.subr.mxu0 0.0
    %504 = vmatpush2.msra.mxu0 0.0
    %505 = vmatprep.subr.mxu0 0.0
    %506 = vmatpush2.msra.mxu0 0.0
    %507 = vmatprep.subr.mxu0 0.0
    %508 = vmatpush2.msra.mxu0 0.0
    %509 = vmatprep.subr.mxu0 0.0
    %510 = vmatpush2.msra.mxu0 0.0
    %511 = vmatprep.subr.mxu0 0.0
    %512 = vmatpush2.msra.mxu0 0.0
    %513 = vmatprep.subr.mxu0 0.0
    %514 = vmatpush2.msra.mxu0 0.0
    %515 = vmatprep.subr.mxu0 0.0
    %516 = vmatpush2.msra.mxu0 0.0
    %517 = vmatprep.subr.mxu0 0.0
    %518 = vmatpush2.msra.mxu0 0.0
    %519 = vmatprep.subr.mxu0 0.0
    %520 = vmatpush2.msra.mxu0 0.0
    %521 = vmatprep.subr.mxu0 0.0
    %522 = vmatpush2.msra.mxu0 0.0
    %523 = vmatprep.subr.mxu0 0.0
    %524 = vmatpush2.msra.mxu0 0.0
    %525 = vmatprep.subr.mxu0 0.0
    %526 = vmatpush2.msra.mxu0 0.0
    %527 = vmatprep.mubr.f32.mxu0 0.0
    %528 = vmatmul.mubr.f32.gmra.mxu0 %v226
    %v529 = vpop.f32.mrf.mxu0
    %v530 = vadd.f32 0.0, %v529
    %v531 = vpop.f32.mrf.mxu0
    %532 = vmatprep.mubr.f32.mxu0 0.0
    %533 = vmatmul.mubr.f32.gmra.mxu0 %v229
    %v534 = vpop.f32.mrf.mxu0
    %v535 = vadd.f32 0.0, %v534
    %v536 = vpop.f32.mrf.mxu0
    %537 = vdwg.mxu0
    %v538 = vadd.f32 %v455, %v530
    %v539 = vadd.f32 %v460, %v535
    %s540 = sadd.s32 %s308, 1
    %s541 = smul.u32 %s540, 16
    %s542 = scalar_lea.vmem [#allocation2], %s541
    %543 = vst [vmem:[%s542] sm:$0xff] %v538
    %544 = vst [vmem:[%s542 + $0x8] sm:$0xff] %v539
    %545 = vmatprep.subr.mxu0 0.0
    %546 = vmatpush1.msra.mxu0 0.0
    %547 = vmatprep.subr.mxu0 0.0
    %548 = vmatpush1.msra.mxu0 0.0
    %549 = vmatprep.subr.mxu0 0.0
    %550 = vmatpush1.msra.mxu0 0.0
    %551 = vmatprep.subr.mxu0 0.0
    %552 = vmatpush1.msra.mxu0 0.0
    %553 = vmatprep.subr.mxu0 0.0
    %554 = vmatpush1.msra.mxu0 0.0
    %555 = vmatprep.subr.mxu0 0.0
    %556 = vmatpush1.msra.mxu0 0.0
    %557 = vmatprep.subr.mxu0 0.0
    %558 = vmatpush1.msra.mxu0 0.0
    %559 = vmatprep.subr.mxu0 0.0
    %560 = vmatpush1.msra.mxu0 0.0
    %561 = vmatprep.subr.mxu0 0.0
    %562 = vmatpush1.msra.mxu0 0.0
    %563 = vmatprep.subr.mxu0 0.0
    %564 = vmatpush1.msra.mxu0 0.0
    %565 = vmatprep.subr.mxu0 0.0
    %566 = vmatpush1.msra.mxu0 0.0
    %567 = vmatprep.subr.mxu0 0.0
    %568 = vmatpush1.msra.mxu0 0.0
    %569 = vmatprep.subr.mxu0 0.0
    %570 = vmatpush1.msra.mxu0 0.0
    %571 = vmatprep.subr.mxu0 0.0
    %572 = vmatpush1.msra.mxu0 0.0
    %573 = vmatprep.subr.mxu0 0.0
    %574 = vmatpush1.msra.mxu0 0.0
    %575 = vmatprep.subr.mxu0 0.0
    %576 = vmatpush1.msra.mxu0 %v20
    %577 = vmatprep.subr.mxu0 0.0
    %578 = vmatpush2.msra.mxu0 0.0
    %579 = vmatprep.subr.mxu0 0.0
    %580 = vmatpush2.msra.mxu0 0.0
    %581 = vmatprep.subr.mxu0 0.0
    %582 = vmatpush2.msra.mxu0 0.0
    %583 = vmatprep.subr.mxu0 0.0
    %584 = vmatpush2.msra.mxu0 0.0
    %585 = vmatprep.subr.mxu0 0.0
    %586 = vmatpush2.msra.mxu0 0.0
    %587 = vmatprep.subr.mxu0 0.0
    %588 = vmatpush2.msra.mxu0 0.0
    %589 = vmatprep.subr.mxu0 0.0
    %590 = vmatpush2.msra.mxu0 0.0
    %591 = vmatprep.subr.mxu0 0.0
    %592 = vmatpush2.msra.mxu0 0.0
    %593 = vmatprep.subr.mxu0 0.0
    %594 = vmatpush2.msra.mxu0 0.0
    %595 = vmatprep.subr.mxu0 0.0
    %596 = vmatpush2.msra.mxu0 0.0
    %597 = vmatprep.subr.mxu0 0.0
    %598 = vmatpush2.msra.mxu0 0.0
    %599 = vmatprep.subr.mxu0 0.0
    %600 = vmatpush2.msra.mxu0 0.0
    %601 = vmatprep.subr.mxu0 0.0
    %602 = vmatpush2.msra.mxu0 0.0
    %603 = vmatprep.subr.mxu0 0.0
    %604 = vmatpush2.msra.mxu0 0.0
    %605 = vmatprep.subr.mxu0 0.0
    %606 = vmatpush2.msra.mxu0 0.0
    %607 = vmatprep.subr.mxu0 0.0
    %608 = vmatpush2.msra.mxu0 0.0
    %609 = vmatprep.mubr.f32.mxu0 0.0
    %610 = vmatmul.mubr.f32.gmra.mxu0 %v64
    %v611 = vpop.f32.mrf.mxu0
    %v612 = vadd.f32 0.0, %v611
    %v613 = vpop.f32.mrf.mxu0
    %614 = vmatprep.mubr.f32.mxu0 0.0
    %615 = vmatmul.mubr.f32.gmra.mxu0 %v67
    %v616 = vpop.f32.mrf.mxu0
    %v617 = vadd.f32 0.0, %v616
    %v618 = vpop.f32.mrf.mxu0
    %619 = vdwg.mxu0
    %620 = vmatprep.subr.mxu0 0.0
    %621 = vmatpush1.msra.mxu0 0.0
    %622 = vmatprep.subr.mxu0 0.0
    %623 = vmatpush1.msra.mxu0 0.0
    %624 = vmatprep.subr.mxu0 0.0
    %625 = vmatpush1.msra.mxu0 0.0
    %626 = vmatprep.subr.mxu0 0.0
    %627 = vmatpush1.msra.mxu0 0.0
    %628 = vmatprep.subr.mxu0 0.0
    %629 = vmatpush1.msra.mxu0 0.0
    %630 = vmatprep.subr.mxu0 0.0
    %631 = vmatpush1.msra.mxu0 0.0
    %632 = vmatprep.subr.mxu0 0.0
    %633 = vmatpush1.msra.mxu0 0.0
    %634 = vmatprep.subr.mxu0 0.0
    %635 = vmatpush1.msra.mxu0 0.0
    %636 = vmatprep.subr.mxu0 0.0
    %637 = vmatpush1.msra.mxu0 0.0
    %638 = vmatprep.subr.mxu0 0.0
    %639 = vmatpush1.msra.mxu0 0.0
    %640 = vmatprep.subr.mxu0 0.0
    %641 = vmatpush1.msra.mxu0 0.0
    %642 = vmatprep.subr.mxu0 0.0
    %643 = vmatpush1.msra.mxu0 0.0
    %644 = vmatprep.subr.mxu0 0.0
    %645 = vmatpush1.msra.mxu0 0.0
    %646 = vmatprep.subr.mxu0 0.0
    %647 = vmatpush1.msra.mxu0 0.0
    %648 = vmatprep.subr.mxu0 0.0
    %649 = vmatpush1.msra.mxu0 0.0
    %650 = vmatprep.subr.mxu0 0.0
    %651 = vmatpush1.msra.mxu0 %v37
    %652 = vmatprep.subr.mxu0 0.0
    %653 = vmatpush2.msra.mxu0 0.0
    %654 = vmatprep.subr.mxu0 0.0
    %655 = vmatpush2.msra.mxu0 0.0
    %656 = vmatprep.subr.mxu0 0.0
    %657 = vmatpush2.msra.mxu0 0.0
    %658 = vmatprep.subr.mxu0 0.0
    %659 = vmatpush2.msra.mxu0 0.0
    %660 = vmatprep.subr.mxu0 0.0
    %661 = vmatpush2.msra.mxu0 0.0
    %662 = vmatprep.subr.mxu0 0.0
    %663 = vmatpush2.msra.mxu0 0.0
    %664 = vmatprep.subr.mxu0 0.0
    %665 = vmatpush2.msra.mxu0 0.0
    %666 = vmatprep.subr.mxu0 0.0
    %667 = vmatpush2.msra.mxu0 0.0
    %668 = vmatprep.subr.mxu0 0.0
    %669 = vmatpush2.msra.mxu0 0.0
    %670 = vmatprep.subr.mxu0 0.0
    %671 = vmatpush2.msra.mxu0 0.0
    %672 = vmatprep.subr.mxu0 0.0
    %673 = vmatpush2.msra.mxu0 0.0
    %674 = vmatprep.subr.mxu0 0.0
    %675 = vmatpush2.msra.mxu0 0.0
    %676 = vmatprep.subr.mxu0 0.0
    %677 = vmatpush2.msra.mxu0 0.0
    %678 = vmatprep.subr.mxu0 0.0
    %679 = vmatpush2.msra.mxu0 0.0
    %680 = vmatprep.subr.mxu0 0.0
    %681 = vmatpush2.msra.mxu0 0.0
    %682 = vmatprep.subr.mxu0 0.0
    %683 = vmatpush2.msra.mxu0 0.0
    %684 = vmatprep.mubr.f32.mxu0 0.0
    %685 = vmatmul.mubr.f32.gmra.mxu0 %v145
    %v686 = vpop.f32.mrf.mxu0
    %v687 = vadd.f32 %v612, %v686
    %v688 = vpop.f32.mrf.mxu0
    %689 = vmatprep.mubr.f32.mxu0 0.0
    %690 = vmatmul.mubr.f32.gmra.mxu0 %v148
    %v691 = vpop.f32.mrf.mxu0
    %v692 = vadd.f32 %v617, %v691
    %v693 = vpop.f32.mrf.mxu0
    %694 = vdwg.mxu0
    %695 = vmatprep.subr.mxu0 0.0
    %696 = vmatpush1.msra.mxu0 0.0
    %697 = vmatprep.subr.mxu0 0.0
    %698 = vmatpush1.msra.mxu0 0.0
    %699 = vmatprep.subr.mxu0 0.0
    %700 = vmatpush1.msra.mxu0 0.0
    %701 = vmatprep.subr.mxu0 0.0
    %702 = vmatpush1.msra.mxu0 0.0
    %703 = vmatprep.subr.mxu0 0.0
    %704 = vmatpush1.msra.mxu0 0.0
    %705 = vmatprep.subr.mxu0 0.0
    %706 = vmatpush1.msra.mxu0 0.0
    %707 = vmatprep.subr.mxu0 0.0
    %708 = vmatpush1.msra.mxu0 0.0
    %709 = vmatprep.subr.mxu0 0.0
    %710 = vmatpush1.msra.mxu0 0.0
    %711 = vmatprep.subr.mxu0 0.0
    %712 = vmatpush1.msra.mxu0 0.0
    %713 = vmatprep.subr.mxu0 0.0
    %714 = vmatpush1.msra.mxu0 0.0
    %715 = vmatprep.subr.mxu0 0.0
    %716 = vmatpush1.msra.mxu0 0.0
    %717 = vmatprep.subr.mxu0 0.0
    %718 = vmatpush1.msra.mxu0 0.0
    %719 = vmatprep.subr.mxu0 0.0
    %720 = vmatpush1.msra.mxu0 0.0
    %721 = vmatprep.subr.mxu0 0.0
    %722 = vmatpush1.msra.mxu0 0.0
    %723 = vmatprep.subr.mxu0 0.0
    %724 = vmatpush1.msra.mxu0 0.0
    %725 = vmatprep.subr.mxu0 0.0
    %726 = vmatpush1.msra.mxu0 %v52
    %727 = vmatprep.subr.mxu0 0.0
    %728 = vmatpush2.msra.mxu0 0.0
    %729 = vmatprep.subr.mxu0 0.0
    %730 = vmatpush2.msra.mxu0 0.0
    %731 = vmatprep.subr.mxu0 0.0
    %732 = vmatpush2.msra.mxu0 0.0
    %733 = vmatprep.subr.mxu0 0.0
    %734 = vmatpush2.msra.mxu0 0.0
    %735 = vmatprep.subr.mxu0 0.0
    %736 = vmatpush2.msra.mxu0 0.0
    %737 = vmatprep.subr.mxu0 0.0
    %738 = vmatpush2.msra.mxu0 0.0
    %739 = vmatprep.subr.mxu0 0.0
    %740 = vmatpush2.msra.mxu0 0.0
    %741 = vmatprep.subr.mxu0 0.0
    %742 = vmatpush2.msra.mxu0 0.0
    %743 = vmatprep.subr.mxu0 0.0
    %744 = vmatpush2.msra.mxu0 0.0
    %745 = vmatprep.subr.mxu0 0.0
    %746 = vmatpush2.msra.mxu0 0.0
    %747 = vmatprep.subr.mxu0 0.0
    %748 = vmatpush2.msra.mxu0 0.0
    %749 = vmatprep.subr.mxu0 0.0
    %750 = vmatpush2.msra.mxu0 0.0
    %751 = vmatprep.subr.mxu0 0.0
    %752 = vmatpush2.msra.mxu0 0.0
    %753 = vmatprep.subr.mxu0 0.0
    %754 = vmatpush2.msra.mxu0 0.0
    %755 = vmatprep.subr.mxu0 0.0
    %756 = vmatpush2.msra.mxu0 0.0
    %757 = vmatprep.subr.mxu0 0.0
    %758 = vmatpush2.msra.mxu0 0.0
    %759 = vmatprep.mubr.f32.mxu0 0.0
    %760 = vmatmul.mubr.f32.gmra.mxu0 %v226
    %v761 = vpop.f32.mrf.mxu0
    %v762 = vadd.f32 0.0, %v761
    %v763 = vpop.f32.mrf.mxu0
    %764 = vmatprep.mubr.f32.mxu0 0.0
    %765 = vmatmul.mubr.f32.gmra.mxu0 %v229
    %v766 = vpop.f32.mrf.mxu0
    %v767 = vadd.f32 0.0, %v766
    %v768 = vpop.f32.mrf.mxu0
    %769 = vdwg.mxu0
    %v770 = vadd.f32 %v687, %v762
    %v771 = vadd.f32 %v692, %v767
    %s772 = sadd.s32 %s308, 2
    %s773 = smul.u32 %s772, 16
    %s774 = scalar_lea.vmem [#allocation2], %s773
    %775 = vst [vmem:[%s774] sm:$0xff] %v770
    %776 = vst [vmem:[%s774 + $0x8] sm:$0xff] %v771
    %777 = vmatprep.subr.mxu0 0.0
    %778 = vmatpush1.msra.mxu0 0.0
    %779 = vmatprep.subr.mxu0 0.0
    %780 = vmatpush1.msra.mxu0 0.0
    %781 = vmatprep.subr.mxu0 0.0
    %782 = vmatpush1.msra.mxu0 0.0
    %783 = vmatprep.subr.mxu0 0.0
    %784 = vmatpush1.msra.mxu0 0.0
    %785 = vmatprep.subr.mxu0 0.0
    %786 = vmatpush1.msra.mxu0 0.0
    %787 = vmatprep.subr.mxu0 0.0
    %788 = vmatpush1.msra.mxu0 0.0
    %789 = vmatprep.subr.mxu0 0.0
    %790 = vmatpush1.msra.mxu0 0.0
    %791 = vmatprep.subr.mxu0 0.0
    %792 = vmatpush1.msra.mxu0 0.0
    %793 = vmatprep.subr.mxu0 0.0
    %794 = vmatpush1.msra.mxu0 0.0
    %795 = vmatprep.subr.mxu0 0.0
    %796 = vmatpush1.msra.mxu0 0.0
    %797 = vmatprep.subr.mxu0 0.0
    %798 = vmatpush1.msra.mxu0 0.0
    %799 = vmatprep.subr.mxu0 0.0
    %800 = vmatpush1.msra.mxu0 0.0
    %801 = vmatprep.subr.mxu0 0.0
    %802 = vmatpush1.msra.mxu0 0.0
    %803 = vmatprep.subr.mxu0 0.0
    %804 = vmatpush1.msra.mxu0 0.0
    %805 = vmatprep.subr.mxu0 0.0
    %806 = vmatpush1.msra.mxu0 0.0
    %807 = vmatprep.subr.mxu0 0.0
    %808 = vmatpush1.msra.mxu0 %v21
    %809 = vmatprep.subr.mxu0 0.0
    %810 = vmatpush2.msra.mxu0 0.0
    %811 = vmatprep.subr.mxu0 0.0
    %812 = vmatpush2.msra.mxu0 0.0
    %813 = vmatprep.subr.mxu0 0.0
    %814 = vmatpush2.msra.mxu0 0.0
    %815 = vmatprep.subr.mxu0 0.0
    %816 = vmatpush2.msra.mxu0 0.0
    %817 = vmatprep.subr.mxu0 0.0
    %818 = vmatpush2.msra.mxu0 0.0
    %819 = vmatprep.subr.mxu0 0.0
    %820 = vmatpush2.msra.mxu0 0.0
    %821 = vmatprep.subr.mxu0 0.0
    %822 = vmatpush2.msra.mxu0 0.0
    %823 = vmatprep.subr.mxu0 0.0
    %824 = vmatpush2.msra.mxu0 0.0
    %825 = vmatprep.subr.mxu0 0.0
    %826 = vmatpush2.msra.mxu0 0.0
    %827 = vmatprep.subr.mxu0 0.0
    %828 = vmatpush2.msra.mxu0 0.0
    %829 = vmatprep.subr.mxu0 0.0
    %830 = vmatpush2.msra.mxu0 0.0
    %831 = vmatprep.subr.mxu0 0.0
    %832 = vmatpush2.msra.mxu0 0.0
    %833 = vmatprep.subr.mxu0 0.0
    %834 = vmatpush2.msra.mxu0 0.0
    %835 = vmatprep.subr.mxu0 0.0
    %836 = vmatpush2.msra.mxu0 0.0
    %837 = vmatprep.subr.mxu0 0.0
    %838 = vmatpush2.msra.mxu0 0.0
    %839 = vmatprep.subr.mxu0 0.0
    %840 = vmatpush2.msra.mxu0 0.0
    %841 = vmatprep.mubr.f32.mxu0 0.0
    %842 = vmatmul.mubr.f32.gmra.mxu0 %v64
    %v843 = vpop.f32.mrf.mxu0
    %v844 = vadd.f32 0.0, %v843
    %v845 = vpop.f32.mrf.mxu0
    %846 = vmatprep.mubr.f32.mxu0 0.0
    %847 = vmatmul.mubr.f32.gmra.mxu0 %v67
    %v848 = vpop.f32.mrf.mxu0
    %v849 = vadd.f32 0.0, %v848
    %v850 = vpop.f32.mrf.mxu0
    %851 = vdwg.mxu0
    %852 = vmatprep.subr.mxu0 0.0
    %853 = vmatpush1.msra.mxu0 0.0
    %854 = vmatprep.subr.mxu0 0.0
    %855 = vmatpush1.msra.mxu0 0.0
    %856 = vmatprep.subr.mxu0 0.0
    %857 = vmatpush1.msra.mxu0 0.0
    %858 = vmatprep.subr.mxu0 0.0
    %859 = vmatpush1.msra.mxu0 0.0
    %860 = vmatprep.subr.mxu0 0.0
    %861 = vmatpush1.msra.mxu0 0.0
    %862 = vmatprep.subr.mxu0 0.0
    %863 = vmatpush1.msra.mxu0 0.0
    %864 = vmatprep.subr.mxu0 0.0
    %865 = vmatpush1.msra.mxu0 0.0
    %866 = vmatprep.subr.mxu0 0.0
    %867 = vmatpush1.msra.mxu0 0.0
    %868 = vmatprep.subr.mxu0 0.0
    %869 = vmatpush1.msra.mxu0 0.0
    %870 = vmatprep.subr.mxu0 0.0
    %871 = vmatpush1.msra.mxu0 0.0
    %872 = vmatprep.subr.mxu0 0.0
    %873 = vmatpush1.msra.mxu0 0.0
    %874 = vmatprep.subr.mxu0 0.0
    %875 = vmatpush1.msra.mxu0 0.0
    %876 = vmatprep.subr.mxu0 0.0
    %877 = vmatpush1.msra.mxu0 0.0
    %878 = vmatprep.subr.mxu0 0.0
    %879 = vmatpush1.msra.mxu0 0.0
    %880 = vmatprep.subr.mxu0 0.0
    %881 = vmatpush1.msra.mxu0 0.0
    %882 = vmatprep.subr.mxu0 0.0
    %883 = vmatpush1.msra.mxu0 %v38
    %884 = vmatprep.subr.mxu0 0.0
    %885 = vmatpush2.msra.mxu0 0.0
    %886 = vmatprep.subr.mxu0 0.0
    %887 = vmatpush2.msra.mxu0 0.0
    %888 = vmatprep.subr.mxu0 0.0
    %889 = vmatpush2.msra.mxu0 0.0
    %890 = vmatprep.subr.mxu0 0.0
    %891 = vmatpush2.msra.mxu0 0.0
    %892 = vmatprep.subr.mxu0 0.0
    %893 = vmatpush2.msra.mxu0 0.0
    %894 = vmatprep.subr.mxu0 0.0
    %895 = vmatpush2.msra.mxu0 0.0
    %896 = vmatprep.subr.mxu0 0.0
    %897 = vmatpush2.msra.mxu0 0.0
    %898 = vmatprep.subr.mxu0 0.0
    %899 = vmatpush2.msra.mxu0 0.0
    %900 = vmatprep.subr.mxu0 0.0
    %901 = vmatpush2.msra.mxu0 0.0
    %902 = vmatprep.subr.mxu0 0.0
    %903 = vmatpush2.msra.mxu0 0.0
    %904 = vmatprep.subr.mxu0 0.0
    %905 = vmatpush2.msra.mxu0 0.0
    %906 = vmatprep.subr.mxu0 0.0
    %907 = vmatpush2.msra.mxu0 0.0
    %908 = vmatprep.subr.mxu0 0.0
    %909 = vmatpush2.msra.mxu0 0.0
    %910 = vmatprep.subr.mxu0 0.0
    %911 = vmatpush2.msra.mxu0 0.0
    %912 = vmatprep.subr.mxu0 0.0
    %913 = vmatpush2.msra.mxu0 0.0
    %914 = vmatprep.subr.mxu0 0.0
    %915 = vmatpush2.msra.mxu0 0.0
    %916 = vmatprep.mubr.f32.mxu0 0.0
    %917 = vmatmul.mubr.f32.gmra.mxu0 %v145
    %v918 = vpop.f32.mrf.mxu0
    %v919 = vadd.f32 %v844, %v918
    %v920 = vpop.f32.mrf.mxu0
    %921 = vmatprep.mubr.f32.mxu0 0.0
    %922 = vmatmul.mubr.f32.gmra.mxu0 %v148
    %v923 = vpop.f32.mrf.mxu0
    %v924 = vadd.f32 %v849, %v923
    %v925 = vpop.f32.mrf.mxu0
    %926 = vdwg.mxu0
    %927 = vmatprep.subr.mxu0 0.0
    %928 = vmatpush1.msra.mxu0 0.0
    %929 = vmatprep.subr.mxu0 0.0
    %930 = vmatpush1.msra.mxu0 0.0
    %931 = vmatprep.subr.mxu0 0.0
    %932 = vmatpush1.msra.mxu0 0.0
    %933 = vmatprep.subr.mxu0 0.0
    %934 = vmatpush1.msra.mxu0 0.0
    %935 = vmatprep.subr.mxu0 0.0
    %936 = vmatpush1.msra.mxu0 0.0
    %937 = vmatprep.subr.mxu0 0.0
    %938 = vmatpush1.msra.mxu0 0.0
    %939 = vmatprep.subr.mxu0 0.0
    %940 = vmatpush1.msra.mxu0 0.0
    %941 = vmatprep.subr.mxu0 0.0
    %942 = vmatpush1.msra.mxu0 0.0
    %943 = vmatprep.subr.mxu0 0.0
    %944 = vmatpush1.msra.mxu0 0.0
    %945 = vmatprep.subr.mxu0 0.0
    %946 = vmatpush1.msra.mxu0 0.0
    %947 = vmatprep.subr.mxu0 0.0
    %948 = vmatpush1.msra.mxu0 0.0
    %949 = vmatprep.subr.mxu0 0.0
    %950 = vmatpush1.msra.mxu0 0.0
    %951 = vmatprep.subr.mxu0 0.0
    %952 = vmatpush1.msra.mxu0 0.0
    %953 = vmatprep.subr.mxu0 0.0
    %954 = vmatpush1.msra.mxu0 0.0
    %955 = vmatprep.subr.mxu0 0.0
    %956 = vmatpush1.msra.mxu0 0.0
    %957 = vmatprep.subr.mxu0 0.0
    %958 = vmatpush1.msra.mxu0 %v53
    %959 = vmatprep.subr.mxu0 0.0
    %960 = vmatpush2.msra.mxu0 0.0
    %961 = vmatprep.subr.mxu0 0.0
    %962 = vmatpush2.msra.mxu0 0.0
    %963 = vmatprep.subr.mxu0 0.0
    %964 = vmatpush2.msra.mxu0 0.0
    %965 = vmatprep.subr.mxu0 0.0
    %966 = vmatpush2.msra.mxu0 0.0
    %967 = vmatprep.subr.mxu0 0.0
    %968 = vmatpush2.msra.mxu0 0.0
    %969 = vmatprep.subr.mxu0 0.0
    %970 = vmatpush2.msra.mxu0 0.0
    %971 = vmatprep.subr.mxu0 0.0
    %972 = vmatpush2.msra.mxu0 0.0
    %973 = vmatprep.subr.mxu0 0.0
    %974 = vmatpush2.msra.mxu0 0.0
    %975 = vmatprep.subr.mxu0 0.0
    %976 = vmatpush2.msra.mxu0 0.0
    %977 = vmatprep.subr.mxu0 0.0
    %978 = vmatpush2.msra.mxu0 0.0
    %979 = vmatprep.subr.mxu0 0.0
    %980 = vmatpush2.msra.mxu0 0.0
    %981 = vmatprep.subr.mxu0 0.0
    %982 = vmatpush2.msra.mxu0 0.0
    %983 = vmatprep.subr.mxu0 0.0
    %984 = vmatpush2.msra.mxu0 0.0
    %985 = vmatprep.subr.mxu0 0.0
    %986 = vmatpush2.msra.mxu0 0.0
    %987 = vmatprep.subr.mxu0 0.0
    %988 = vmatpush2.msra.mxu0 0.0
    %989 = vmatprep.subr.mxu0 0.0
    %990 = vmatpush2.msra.mxu0 0.0
    %991 = vmatprep.mubr.f32.mxu0 0.0
    %992 = vmatmul.mubr.f32.gmra.mxu0 %v226
    %v993 = vpop.f32.mrf.mxu0
    %v994 = vadd.f32 0.0, %v993
    %v995 = vpop.f32.mrf.mxu0
    %996 = vmatprep.mubr.f32.mxu0 0.0
    %997 = vmatmul.mubr.f32.gmra.mxu0 %v229
    %v998 = vpop.f32.mrf.mxu0
    %v999 = vadd.f32 0.0, %v998
    %v1000 = vpop.f32.mrf.mxu0
    %1001 = vdwg.mxu0
    %v1002 = vadd.f32 %v919, %v994
    %v1003 = vadd.f32 %v924, %v999
    %s1004 = sadd.s32 %s308, 3
    %s1005 = smul.u32 %s1004, 16
    %s1006 = scalar_lea.vmem [#allocation2], %s1005
    %1007 = vst [vmem:[%s1006] sm:$0xff] %v1002
    %1008 = vst [vmem:[%s1006 + $0x8] sm:$0xff] %v1003
    %p1009 = scmp.eq.s32.totalorder 0, 0
    // Predicated region
    $region18: #{tpu_custom_call.1} parent=1 // pred_check
      %p1010 = pneg %p1009
    $region19: #{tpu_custom_call.1} parent=1 // pred_check_branch
      %1012 = sbr.rel (%p1010) target = $region21
    $region20: #{tpu_custom_call.1} parent=1 // pred_region
      %v1013 = vld [vmem:[#allocation2] sm:$0xff]
      %v1014 = vld [vmem:[#allocation2 + $0x8] sm:$0xff]
      %v1015 = vld [vmem:[#allocation2 + $0x10] sm:$0xff]
      %v1016 = vld [vmem:[#allocation2 + $0x18] sm:$0xff]
      %v1017 = vld [vmem:[#allocation2 + $0x20] sm:$0xff]
      %v1018 = vld [vmem:[#allocation2 + $0x28] sm:$0xff]
      %v1019 = vld [vmem:[#allocation2 + $0x30] sm:$0xff]
      %v1020 = vld [vmem:[#allocation2 + $0x38] sm:$0xff]
      %1021 = vadd.xlane.f32.xlu0 %v1013
      %v1022 = vpop.xlane.xlu0 %1021
      %1023 = vadd.xlane.f32.xlu0 %v1014
      %v1024 = vpop.xlane.xlu0 %1023
      %1025 = vadd.xlane.f32.xlu0 %v1015
      %v1026 = vpop.xlane.xlu0 %1025
      %1027 = vadd.xlane.f32.xlu0 %v1016
      %v1028 = vpop.xlane.xlu0 %1027
      %1029 = vadd.xlane.f32.xlu0 %v1017
      %v1030 = vpop.xlane.xlu0 %1029
      %1031 = vadd.xlane.f32.xlu0 %v1018
      %v1032 = vpop.xlane.xlu0 %1031
      %1033 = vadd.xlane.f32.xlu0 %v1019
      %v1034 = vpop.xlane.xlu0 %1033
      %1035 = vadd.xlane.f32.xlu0 %v1020
      %v1036 = vpop.xlane.xlu0 %1035
      %v1037 = vadd.f32 %v1022, %v1026
      %v1038 = vadd.f32 %v1037, %v1030
      %v1039 = vadd.f32 %v1038, %v1034
      %v1040 = vadd.f32 %v1024, %v1028
      %v1041 = vadd.f32 %v1040, %v1032
      %v1042 = vadd.f32 %v1041, %v1036
      %v1043 = vmul.f32 %v1039, 0.001953125
      %v1044 = vmul.f32 %v1042, 0.001953125
      %v1045 = vsub.f32 %v1013, %v1043
      %v1046 = vsub.f32 %v1014, %v1044
      %v1047 = vsub.f32 %v1015, %v1043
      %v1048 = vsub.f32 %v1016, %v1044
      %v1049 = vsub.f32 %v1017, %v1043
      %v1050 = vsub.f32 %v1018, %v1044
      %v1051 = vsub.f32 %v1019, %v1043
      %v1052 = vsub.f32 %v1020, %v1044
      %v1053 = vmul.f32 %v1045, %v1045
      %v1054 = vmul.f32 %v1046, %v1046
      %v1055 = vmul.f32 %v1047, %v1047
      %v1056 = vmul.f32 %v1048, %v1048
      %v1057 = vmul.f32 %v1049, %v1049
      %v1058 = vmul.f32 %v1050, %v1050
      %v1059 = vmul.f32 %v1051, %v1051
      %v1060 = vmul.f32 %v1052, %v1052
      %1061 = vadd.xlane.f32.xlu0 %v1053
      %v1062 = vpop.xlane.xlu0 %1061
      %1063 = vadd.xlane.f32.xlu0 %v1054
      %v1064 = vpop.xlane.xlu0 %1063
      %1065 = vadd.xlane.f32.xlu0 %v1055
      %v1066 = vpop.xlane.xlu0 %1065
      %1067 = vadd.xlane.f32.xlu0 %v1056
      %v1068 = vpop.xlane.xlu0 %1067
      %1069 = vadd.xlane.f32.xlu0 %v1057
      %v1070 = vpop.xlane.xlu0 %1069
      %1071 = vadd.xlane.f32.xlu0 %v1058
      %v1072 = vpop.xlane.xlu0 %1071
      %1073 = vadd.xlane.f32.xlu0 %v1059
      %v1074 = vpop.xlane.xlu0 %1073
      %1075 = vadd.xlane.f32.xlu0 %v1060
      %v1076 = vpop.xlane.xlu0 %1075
      %v1077 = vadd.f32 %v1062, %v1066
      %v1078 = vadd.f32 %v1077, %v1070
      %v1079 = vadd.f32 %v1078, %v1074
      %v1080 = vadd.f32 %v1064, %v1068
      %v1081 = vadd.f32 %v1080, %v1072
      %v1082 = vadd.f32 %v1081, %v1076
      %v1083 = vmul.f32 %v1079, 0.001953125
      %v1084 = vmul.f32 %v1082, 0.001953125
      %v1085 = vld [vmem:[%s2] sm:$0xff]
      %v1086 = vld [vmem:[%s2 + $0x8] sm:$0xff]
      %v1087 = vadd.f32 %v1083, 1e-05
      %v1088 = vadd.f32 %v1084, 1e-05
      %v1089 = vrsqrt.pop %v1087
      %v1090 = vrsqrt.pop %v1088
      %v1091 = vmul.f32 %v1085, %v1089
      %v1092 = vmul.f32 %v1086, %v1090
      %v1093 = vld [vmem:[%s3] sm:$0xff]
      %v1094 = vld [vmem:[%s3 + $0x8] sm:$0xff]
      %v1095 = vmul.f32 %v1043, %v1091
      %v1096 = vmul.f32 %v1044, %v1092
      %v1097 = vsub.f32 %v1093, %v1095
      %v1098 = vsub.f32 %v1094, %v1096
      %1100 = vset.pattern.permute.xlu0 0
      %1101 = vperm.xlu0 %1100, %v1091
      %v1102 = vpop.permute.xlu0 %1101
      %1105 = vset.pattern.permute.xlu0 0
      %1106 = vperm.xlu0 %1105, %v1092
      %v1107 = vpop.permute.xlu0 %1106
      %v1109 = vmul.f32 %v1013, %v1102
      %v1110 = vmul.f32 %v1014, %v1107
      %v1111 = vmul.f32 %v1015, %v1102
      %v1112 = vmul.f32 %v1016, %v1107
      %v1113 = vmul.f32 %v1017, %v1102
      %v1114 = vmul.f32 %v1018, %v1107
      %v1115 = vmul.f32 %v1019, %v1102
      %v1116 = vmul.f32 %v1020, %v1107
      %1118 = vset.pattern.permute.xlu0 0
      %1119 = vperm.xlu0 %1118, %v1097
      %v1120 = vpop.permute.xlu0 %1119
      %1123 = vset.pattern.permute.xlu0 0
      %1124 = vperm.xlu0 %1123, %v1098
      %v1125 = vpop.permute.xlu0 %1124
      %v1127 = vadd.f32 %v1109, %v1120
      %v1128 = vadd.f32 %v1110, %v1125
      %v1129 = vadd.f32 %v1111, %v1120
      %v1130 = vadd.f32 %v1112, %v1125
      %v1131 = vadd.f32 %v1113, %v1120
      %v1132 = vadd.f32 %v1114, %v1125
      %v1133 = vadd.f32 %v1115, %v1120
      %v1134 = vadd.f32 %v1116, %v1125
      %v1135 = vmax.f32 %v1127, 0.0
      %v1136 = vmax.f32 %v1128, 0.0
      %v1137 = vmax.f32 %v1129, 0.0
      %v1138 = vmax.f32 %v1130, 0.0
      %v1139 = vmax.f32 %v1131, 0.0
      %v1140 = vmax.f32 %v1132, 0.0
      %v1141 = vmax.f32 %v1133, 0.0
      %v1142 = vmax.f32 %v1134, 0.0
      %1143 = vst [vmem:[#allocation2] sm:$0xff] %v1135
      %1144 = vst [vmem:[#allocation2 + $0x8] sm:$0xff] %v1136
      %1145 = vst [vmem:[#allocation2 + $0x10] sm:$0xff] %v1137
      %1146 = vst [vmem:[#allocation2 + $0x18] sm:$0xff] %v1138
      %1147 = vst [vmem:[#allocation2 + $0x20] sm:$0xff] %v1139
      %1148 = vst [vmem:[#allocation2 + $0x28] sm:$0xff] %v1140
      %1149 = vst [vmem:[#allocation2 + $0x30] sm:$0xff] %v1141
      %1150 = vst [vmem:[#allocation2 + $0x38] sm:$0xff] %v1142
    $region21: #{tpu_custom_call.1} parent=1 // pred_fallthru
      _
    // Predicated region
    $region22: #{tpu_custom_call.1} parent=1 // pred_check
      _
    $region23: #{tpu_custom_call.1} parent=1 // pred_check_branch
      %1152 = sbr.rel (0) target = $region25
    $region24: #{tpu_custom_call.1} parent=1 // pred_region
      %s1154 = ssub.s32 1024, 1024
      %1155 = vsyncadd [#allocation3], %s1154
      %s1156 = sshll.u32 [#allocation2], 4
      %s1157 = int_to_ptr.vmem [resolvable:$true] %s1156
      %1162 = dma.vmem_to_hbm [thread:$0]  %s1157, 1024, %s4, [#allocation3], 128, 128, 8
    $region25: #{tpu_custom_call.1} parent=1 // pred_fallthru
      _
    // Predicated region
    $region26: #{tpu_custom_call.1} parent=1 // pred_check
      _
    $region27: #{tpu_custom_call.1} parent=1 // pred_check_branch
      %1164 = sbr.rel (0) target = $region29
    $region28: #{tpu_custom_call.1} parent=1 // pred_region
      %1165 = dma.done [#allocation3], 1024
    $region29: #{tpu_custom_call.1} parent=1 // pred_fallthru
      _
    %1166 = vsyncpa [#allocation3], 1

</llo_original>
